<compile_context>
chip_gen: v7x
topology: tpu7x:2x2x1
jax: 0.10.0
libtpu: 0.0.40
codegen_flags: <defaults>
</compile_context>

<pallas_src>
import functools
import math

import jax
import jax.numpy as jnp
from jax import lax
from jax.experimental import pallas as pl
from jax.experimental.pallas import tpu as pltpu


def _add_ln_mask(y, res, gamma, beta, fmask, eps=1e-5):
    """LayerNorm(y + res) over channels (affine), then * float time mask."""
    z = y + res
    mean = jnp.mean(z, axis=-1, keepdims=True)
    zc = z - mean
    var = jnp.mean(zc * zc, axis=-1, keepdims=True)
    return (zc * lax.rsqrt(var + eps) * gamma + beta) * fmask


def _conv1d_same(x, w_ref, bias, ksize):
    """'same' Conv1d over time as k pointwise-tap matmuls.

    y[t] = sum_j x[t + j - pad] @ W[j].  The time shift is applied to the f32
    matmul OUTPUT with pltpu.roll (XLU, overlaps MXU pushes) and the wrapped
    rows are zeroed with a static edge mask, so there is no padded VMEM
    scratch, no sublane-unaligned slice relayout, and the bf16 cast of the
    conv input happens exactly once.
    """
    B, T, Cin = x.shape
    Cout = w_ref.shape[-1]
    pad = (ksize - 1) // 2
    xb = x.astype(jnp.bfloat16).reshape(B * T, Cin)         # single bf16 cast
    t_idx = lax.broadcasted_iota(jnp.int32, (1, T, 1), 1)
    acc = jnp.zeros((B, T, Cout), jnp.float32)
    for j in range(ksize):                                  # static tap loop
        z = jnp.dot(xb, w_ref[0, j],
                    preferred_element_type=jnp.float32).reshape(B, T, Cout)
        s = pad - j                                         # np.roll-convention shift
        if s != 0:
            z = pltpu.roll(z, s % T, axis=1)
            edge = jnp.logical_and(t_idx >= s, t_idx < T + s).astype(jnp.float32)
            z = z * edge                                    # zero out-of-range rows
        acc = acc + z
    return acc + bias


def fft_stack_kernel(x_in_ref, negmask_ref, fmask_ref,
                     wqkv_ref, bqkv_ref, wo_ref, bo_ref,
                     ln1_g_ref, ln1_b_ref,
                     w1_ref, b1_ref, w2_ref, b2_ref,
                     ln2_g_ref, ln2_b_ref,
                     out_ref,
                     *, num_heads, ksize):
    """grid = (batch_tiles, stack); inner grid step == one FFT block.
    out_ref (constant block index across the stack axis) doubles as the
    VMEM-resident activation carry between blocks."""
    s = pl.program_id(1)
    Bt, T, C = out_ref.shape
    Dh = C // num_heads
    scale = 1.0 / math.sqrt(Dh)

    @pl.when(s == 0)
    def _init():
        out_ref[...] = x_in_ref[...]

    x = out_ref[...]                    # [Bt, T, C]  f32 activation carry
    neg = negmask_ref[...]              # [Bt, 1, T]  additive key-padding mask
    fmask = fmask_ref[...]              # [Bt, T, 1]  1.0 on valid frames

    # ----------------- self-attention sublayer (real per-head slices) --------
    xb = x.astype(jnp.bfloat16).reshape(Bt * T, C)
    qkv = (jnp.dot(xb, wqkv_ref[0], preferred_element_type=jnp.float32)
           + bqkv_ref[0]).reshape(Bt, T, 3 * C)

    ctx_heads = []
    for h in range(num_heads):          # static head loop; Dh-wide contractions
        lo = h * Dh
        qh = qkv[:, :, lo:lo + Dh].astype(jnp.bfloat16)
        kh = qkv[:, :, C + lo:C + lo + Dh].astype(jnp.bfloat16)
        vh = qkv[:, :, 2 * C + lo:2 * C + lo + Dh].astype(jnp.bfloat16)
        sc = jnp.einsum('bqd,bkd->bqk', qh, kh,
                        preferred_element_type=jnp.float32) * scale + neg
        sc = sc - jnp.max(sc, axis=-1, keepdims=True)
        e = jnp.exp(sc)
        p = e * pl.reciprocal(jnp.sum(e, axis=-1, keepdims=True), approx=True)
        ctx_heads.append(jnp.einsum('bqk,bkd->bqd', p.astype(jnp.bfloat16), vh,
                                    preferred_element_type=jnp.float32))
    ctx = jnp.concatenate(ctx_heads, axis=-1)               # [Bt, T, C] f32

    sa = (jnp.dot(ctx.astype(jnp.bfloat16).reshape(Bt * T, C), wo_ref[0],
                  preferred_element_type=jnp.float32).reshape(Bt, T, C)
          + bo_ref[0])
    x = _add_ln_mask(sa, x, ln1_g_ref[0], ln1_b_ref[0], fmask)

    # ------------------------- Conv1d FFN sublayer ---------------------------
    h1 = jnp.maximum(_conv1d_same(x, w1_ref, b1_ref[0], ksize), 0.0)
    y = _conv1d_same(h1, w2_ref, b2_ref[0], ksize)
    x = _add_ln_mask(y, x, ln2_g_ref[0], ln2_b_ref[0], fmask)

    out_ref[...] = x                    # carry to next block / final output
    # Encoder-level `encodings * float_masks` is already satisfied (ln2 path
    # multiplied by the 0/1 fmask), so no extra finalize multiply is needed.


# ------------------------------------------------------------------------------
# Parameters & forward wrapper
# ------------------------------------------------------------------------------
def init_params(key, *, channels, num_heads, ffn_kernel_size, stack):
    del num_heads  # head count only affects the kernel, not parameter shapes
    C = channels
    C4 = 4 * C
    ks = jax.random.split(key, 4)

    def w(k, shape):  # matmul weights stored in bf16 (MXU-native inputs)
        return (0.02 * jax.random.normal(k, shape, jnp.float32)).astype(jnp.bfloat16)

    return {
        # fused in_proj weight, stored transposed for x @ W  ([stack, C, 3C])
        "wqkv": w(ks[0], (stack, C, 3 * C)),
        "bqkv": jnp.zeros((stack, 1, 3 * C), jnp.float32),
        "wo": w(ks[1], (stack, C, C)),
        "bo": jnp.zeros((stack, 1, C), jnp.float32),
        "ln1_g": jnp.ones((stack, 1, C), jnp.float32),
        "ln1_b": jnp.zeros((stack, 1, C), jnp.float32),
        # Conv1d weights stored pre-transposed as [stack, k, Cin, Cout]
        "ffn_w1": w(ks[2], (stack, ffn_kernel_size, C, C4)),
        "ffn_b1": jnp.zeros((stack, 1, C4), jnp.float32),
        "ffn_w2": w(ks[3], (stack, ffn_kernel_size, C4, C)),
        "ffn_b2": jnp.zeros((stack, 1, C), jnp.float32),
        "ln2_g": jnp.ones((stack, 1, C), jnp.float32),
        "ln2_b": jnp.zeros((stack, 1, C), jnp.float32),
    }


def _vmem_limit_bytes(Bt, T, C, C4, ksize):
    """Explicit scoped-VMEM budget: carry + temporaries + double-buffered weights."""
    f32, bf16 = 4, 2
    act = Bt * T * C * f32                                   # out-ref carry / x_in block
    tmps = Bt * T * (3 * C + C + C4) * f32                   # qkv + ctx + h1
    scores = 2 * Bt * T * T * f32                            # per-head score/prob temps
    weights = (C * 3 * C + C * C + ksize * C * C4 + ksize * C4 * C) * bf16
    est = 3 * act + tmps + scores + 2 * weights + (2 << 20)  # 2x weights: double-buffer
    return int(min(max(2 * est, 32 * 1024 * 1024), 64 * 1024 * 1024))


def phoneme_to_note_encoder(encodings, lengths, params, *, num_heads, batch_tile=None):
    """
    encodings: [Batch, Enc_d, Token_t]  (channel-first, PyTorch layout)
    lengths:   [Batch] int32 or None
    returns:   [Batch, Enc_d, Token_t]
    """
    x = jnp.transpose(encodings, (0, 2, 1)).astype(jnp.float32)   # [B, T, C] time-major
    B, T, C = x.shape
    if lengths is None:
        lengths = jnp.full((B,), T, jnp.int32)

    # Mask_Generate: sequence >= lengths -> padded; float_masks = 1.0 where valid
    valid = (jnp.arange(T)[None, :] < lengths[:, None]).astype(jnp.float32)  # [B, T]
    fmask_t = valid[:, :, None]                        # [B, T, 1]
    # additive key-padding mask (-1e30 on padded keys); NOTE: length==0 would
    # give a uniform softmax over padding instead of PyTorch's NaN.
    negmask = ((1.0 - valid) * (-1e30))[:, None, :]    # [B, 1, T]

    stack, _, C3 = params["wqkv"].shape
    ksize = params["ffn_w1"].shape[1]
    C4 = params["ffn_w1"].shape[-1]
    assert C3 == 3 * C and C % num_heads == 0
    assert ksize % 2 == 1

    Bt = batch_tile or 1
    assert B % Bt == 0

    xmap = lambda b, s: (b, 0, 0)          # activation / masks: follow the batch tile
    wmap3 = lambda b, s: (s, 0, 0)         # per-block weights: streamed over the stack
    wmap4 = lambda b, s: (s, 0, 0, 0)

    out = pl.pallas_call(
        functools.partial(fft_stack_kernel, num_heads=num_heads, ksize=ksize),
        out_shape=jax.ShapeDtypeStruct((B, T, C), jnp.float32),
        grid=(B // Bt, stack),
        in_specs=[
            pl.BlockSpec((Bt, T, C), xmap),                 # x (fetched once per tile)
            pl.BlockSpec((Bt, 1, T), xmap),                 # additive key mask
            pl.BlockSpec((Bt, T, 1), xmap),                 # float frame mask
            pl.BlockSpec((1, C, 3 * C), wmap3),             # wqkv (bf16)
            pl.BlockSpec((1, 1, 3 * C), wmap3),             # bqkv
            pl.BlockSpec((1, C, C), wmap3),                 # wo (bf16)
            pl.BlockSpec((1, 1, C), wmap3),                 # bo
            pl.BlockSpec((1, 1, C), wmap3),                 # ln1 gamma
            pl.BlockSpec((1, 1, C), wmap3),                 # ln1 beta
            pl.BlockSpec((1, ksize, C, C4), wmap4),         # ffn w1 (bf16)
            pl.BlockSpec((1, 1, C4), wmap3),                # ffn b1
            pl.BlockSpec((1, ksize, C4, C), wmap4),         # ffn w2 (bf16)
            pl.BlockSpec((1, 1, C), wmap3),                 # ffn b2
            pl.BlockSpec((1, 1, C), wmap3),                 # ln2 gamma
            pl.BlockSpec((1, 1, C), wmap3),                 # ln2 beta
        ],
        out_specs=pl.BlockSpec((Bt, T, C), xmap),           # VMEM-resident carry
        compiler_params=pltpu.CompilerParams(
            # batch tiles independent (shards v7x TCs); blocks carry state
            # through out_ref so the stack axis must run in order.
            dimension_semantics=("parallel", "arbitrary"),
            vmem_limit_bytes=_vmem_limit_bytes(Bt, T, C, C4, ksize)),
    )(x, negmask, fmask_t,
      params["wqkv"], params["bqkv"], params["wo"], params["bo"],
      params["ln1_g"], params["ln1_b"],
      params["ffn_w1"], params["ffn_b1"], params["ffn_w2"], params["ffn_b2"],
      params["ln2_g"], params["ln2_b"])

    return jnp.transpose(out, (0, 2, 1))                     # back to [B, Enc_d, T]


# ------------------------------------------------------------------------------
# Example
# ------------------------------------------------------------------------------
if __name__ == "__main__":
    B = 2            # batch
    C = 32           # hp.Encoder.Size
    HEADS = 2        # hp.Encoder.Phoneme_to_Note_Encoder.Head
    K = 3            # hp...FFN.Kernel_Size
    STACK = 2        # hp...Stack
    TOKEN_T = 16     # pooled lyric token length

    key = jax.random.PRNGKey(0)
    k_p, k_x = jax.random.split(key)

    params = init_params(k_p, channels=C, num_heads=HEADS,
                         ffn_kernel_size=K, stack=STACK)

    encodings = jax.random.normal(k_x, (B, C, TOKEN_T), jnp.float32)
    lengths = jnp.array([TOKEN_T, 12], jnp.int32)

    out = phoneme_to_note_encoder(encodings, lengths, params,
                                  num_heads=HEADS, batch_tile=1)
    out = jax.block_until_ready(out)

    assert out.shape == (B, C, TOKEN_T)
    assert bool(jnp.all(jnp.isfinite(out)))
    print("KERNEL_OK")
</pallas_src>

<mosaic_0001>
module attributes {stable_mosaic.version = 11 : i64} {
  func.func @fft_stack_kernel(%arg0: i32, %arg1: i32, %arg2: memref<1x16x32xf32, #tpu.memory_space<vmem>>, %arg3: memref<1x1x16xf32, #tpu.memory_space<vmem>>, %arg4: memref<1x16x1xf32, #tpu.memory_space<vmem>>, %arg5: memref<1x32x96xbf16, #tpu.memory_space<vmem>>, %arg6: memref<1x1x96xf32, #tpu.memory_space<vmem>>, %arg7: memref<1x32x32xbf16, #tpu.memory_space<vmem>>, %arg8: memref<1x1x32xf32, #tpu.memory_space<vmem>>, %arg9: memref<1x1x32xf32, #tpu.memory_space<vmem>>, %arg10: memref<1x1x32xf32, #tpu.memory_space<vmem>>, %arg11: memref<1x3x32x128xbf16, #tpu.memory_space<vmem>>, %arg12: memref<1x1x128xf32, #tpu.memory_space<vmem>>, %arg13: memref<1x3x128x32xbf16, #tpu.memory_space<vmem>>, %arg14: memref<1x1x32xf32, #tpu.memory_space<vmem>>, %arg15: memref<1x1x32xf32, #tpu.memory_space<vmem>>, %arg16: memref<1x1x32xf32, #tpu.memory_space<vmem>>, %arg17: memref<1x16x32xf32, #tpu.memory_space<vmem>>) attributes {dimension_semantics = [#tpu.dimension_semantics<parallel>, #tpu.dimension_semantics<arbitrary>], iteration_bounds = array<i64: 2, 2>, scalar_prefetch = 0 : i64, scratch_operands = 0 : i64, tpu.core_type = #tpu.core_type<tc>, window_params = [{transform_indices = @transform_0, window_bounds = array<i64: 1, 16, 32>}, {transform_indices = @transform_1, window_bounds = array<i64: 1, 1, 16>}, {transform_indices = @transform_2, window_bounds = array<i64: 1, 16, 1>}, {transform_indices = @transform_3, window_bounds = array<i64: 1, 32, 96>}, {transform_indices = @transform_4, window_bounds = array<i64: 1, 1, 96>}, {transform_indices = @transform_5, window_bounds = array<i64: 1, 32, 32>}, {transform_indices = @transform_6, window_bounds = array<i64: 1, 1, 32>}, {transform_indices = @transform_7, window_bounds = array<i64: 1, 1, 32>}, {transform_indices = @transform_8, window_bounds = array<i64: 1, 1, 32>}, {transform_indices = @transform_9, window_bounds = array<i64: 1, 3, 32, 128>}, {transform_indices = @transform_10, window_bounds = array<i64: 1, 1, 128>}, {transform_indices = @transform_11, window_bounds = array<i64: 1, 3, 128, 32>}, {transform_indices = @transform_12, window_bounds = array<i64: 1, 1, 32>}, {transform_indices = @transform_13, window_bounds = array<i64: 1, 1, 32>}, {transform_indices = @transform_14, window_bounds = array<i64: 1, 1, 32>}, {transform_indices = @transform_15, window_bounds = array<i64: 1, 16, 32>}]} {
    %c0_i32 = arith.constant 0 : i32
    %0 = arith.cmpi eq, %arg1, %c0_i32 : i32
    %1 = arith.extui %0 : i1 to i32
    %c0_i32_0 = arith.constant 0 : i32
    %2 = arith.cmpi ne, %1, %c0_i32_0 : i32
    scf.if %2 {
      %c0_102 = arith.constant 0 : index
      %c0_103 = arith.constant 0 : index
      %c0_104 = arith.constant 0 : index
      %223 = vector.load %arg2[%c0_102, %c0_103, %c0_104] : memref<1x16x32xf32, #tpu.memory_space<vmem>>, vector<1x16x32xf32>
      %c0_105 = arith.constant 0 : index
      %c0_106 = arith.constant 0 : index
      %c0_107 = arith.constant 0 : index
      %224 = vector.load %arg17[%c0_105, %c0_106, %c0_107] : memref<1x16x32xf32, #tpu.memory_space<vmem>>, vector<1x16x32xf32>
      tpu.vector_store %arg17[%c0_105, %c0_106, %c0_107], %223 {strides = array<i32>} : memref<1x16x32xf32, #tpu.memory_space<vmem>>, vector<1x16x32xf32>,
    } else {
    }
    %c0 = arith.constant 0 : index
    %c0_1 = arith.constant 0 : index
    %c0_2 = arith.constant 0 : index
    %3 = vector.load %arg17[%c0, %c0_1, %c0_2] : memref<1x16x32xf32, #tpu.memory_space<vmem>>, vector<1x16x32xf32>
    %c0_3 = arith.constant 0 : index
    %c0_4 = arith.constant 0 : index
    %c0_5 = arith.constant 0 : index
    %4 = vector.load %arg3[%c0_3, %c0_4, %c0_5] : memref<1x1x16xf32, #tpu.memory_space<vmem>>, vector<1x1x16xf32>
    %c0_6 = arith.constant 0 : index
    %c0_7 = arith.constant 0 : index
    %c0_8 = arith.constant 0 : index
    %5 = vector.load %arg4[%c0_6, %c0_7, %c0_8] : memref<1x16x1xf32, #tpu.memory_space<vmem>>, vector<1x16x1xf32>
    %6 = arith.truncf %3 : vector<1x16x32xf32> to vector<1x16x32xbf16>
    %7 = vector.shape_cast %6 : vector<1x16x32xbf16> to vector<16x32xbf16>
    %c0_9 = arith.constant 0 : index
    %c0_10 = arith.constant 0 : index
    %c0_11 = arith.constant 0 : index
    %8 = vector.load %arg5[%c0_9, %c0_10, %c0_11] : memref<1x32x96xbf16, #tpu.memory_space<vmem>>, vector<1x32x96xbf16>
    %9 = vector.shape_cast %8 : vector<1x32x96xbf16> to vector<32x96xbf16>
    %cst = arith.constant dense<0.000000e+00> : vector<16x96xf32>
    %10 = tpu.matmul %7, %9, %cst {dimension_numbers = #tpu.dot_dimension_numbers<[1], [0], [0], [1], [0, 0, 1, 1], [], []>} : vector<16x32xbf16>, vector<32x96xbf16>, vector<16x96xf32> -> vector<16x96xf32>
    %c0_12 = arith.constant 0 : index
    %c0_13 = arith.constant 0 : index
    %c0_14 = arith.constant 0 : index
    %11 = vector.load %arg6[%c0_12, %c0_13, %c0_14] : memref<1x1x96xf32, #tpu.memory_space<vmem>>, vector<1x1x96xf32>
    %12 = vector.shape_cast %11 : vector<1x1x96xf32> to vector<1x96xf32>
    %13 = vector.broadcast %12 : vector<1x96xf32> to vector<16x96xf32>
    %14 = arith.addf %10, %13 : vector<16x96xf32>
    %15 = vector.shape_cast %14 : vector<16x96xf32> to vector<1x16x96xf32>
    %16 = vector.extract_strided_slice %15 {offsets = [0, 0, 0], sizes = [1, 16, 16], strides = [1, 1, 1]} : vector<1x16x96xf32> to vector<1x16x16xf32>
    %17 = arith.truncf %16 : vector<1x16x16xf32> to vector<1x16x16xbf16>
    %18 = vector.extract_strided_slice %15 {offsets = [0, 0, 32], sizes = [1, 16, 16], strides = [1, 1, 1]} : vector<1x16x96xf32> to vector<1x16x16xf32>
    %19 = arith.truncf %18 : vector<1x16x16xf32> to vector<1x16x16xbf16>
    %20 = vector.extract_strided_slice %15 {offsets = [0, 0, 64], sizes = [1, 16, 16], strides = [1, 1, 1]} : vector<1x16x96xf32> to vector<1x16x16xf32>
    %21 = arith.truncf %20 : vector<1x16x16xf32> to vector<1x16x16xbf16>
    "tpu.trace_start"() <{level = 10 : i32, message = "bqd,bkd->bqk"}> : () -> ()
    %cst_15 = arith.constant dense<0.000000e+00> : vector<1x16x16xf32>
    %22 = tpu.matmul %17, %19, %cst_15 {dimension_numbers = #tpu.dot_dimension_numbers<[2], [2], [1], [1], [0, 0, 0, 1, 1, 1], [0], [0]>} : vector<1x16x16xbf16>, vector<1x16x16xbf16>, vector<1x16x16xf32> -> vector<1x16x16xf32>
    "tpu.trace_stop"() : () -> ()
    %cst_16 = arith.constant 2.500000e-01 : f32
    %23 = vector.broadcast %cst_16 : f32 to vector<1x16x16xf32>
    %24 = arith.mulf %22, %23 : vector<1x16x16xf32>
    %25 = vector.broadcast %4 : vector<1x1x16xf32> to vector<1x16x16xf32>
    %26 = arith.addf %24, %25 : vector<1x16x16xf32>
    %cst_17 = arith.constant dense<0xFF800000> : vector<1x16xf32>
    %27 = vector.multi_reduction <maximumf>, %26, %cst_17 [2] : vector<1x16x16xf32> to vector<1x16xf32>
    %28 = vector.shape_cast %27 : vector<1x16xf32> to vector<1x16x1xf32>
    %29 = vector.broadcast %28 : vector<1x16x1xf32> to vector<1x16x16xf32>
    %30 = arith.subf %26, %29 : vector<1x16x16xf32>
    %31 = math.exp %30 : vector<1x16x16xf32>
    %cst_18 = arith.constant dense<0.000000e+00> : vector<1x16xf32>
    %32 = vector.multi_reduction <add>, %31, %cst_18 [2] : vector<1x16x16xf32> to vector<1x16xf32>
    %33 = vector.shape_cast %32 : vector<1x16xf32> to vector<1x16x1xf32>
    %34 = tpu.reciprocal %33 {approx = true} : vector<1x16x1xf32> -> vector<1x16x1xf32>
    %35 = vector.broadcast %34 : vector<1x16x1xf32> to vector<1x16x16xf32>
    %36 = arith.mulf %31, %35 : vector<1x16x16xf32>
    %37 = arith.truncf %36 : vector<1x16x16xf32> to vector<1x16x16xbf16>
    "tpu.trace_start"() <{level = 10 : i32, message = "bqk,bkd->bqd"}> : () -> ()
    %cst_19 = arith.constant dense<0.000000e+00> : vector<1x16x16xf32>
    %38 = tpu.matmul %37, %21, %cst_19 {dimension_numbers = #tpu.dot_dimension_numbers<[2], [1], [1], [2], [0, 0, 0, 1, 1, 2], [0], [0]>} : vector<1x16x16xbf16>, vector<1x16x16xbf16>, vector<1x16x16xf32> -> vector<1x16x16xf32>
    "tpu.trace_stop"() : () -> ()
    %39 = vector.extract_strided_slice %15 {offsets = [0, 0, 16], sizes = [1, 16, 16], strides = [1, 1, 1]} : vector<1x16x96xf32> to vector<1x16x16xf32>
    %40 = arith.truncf %39 : vector<1x16x16xf32> to vector<1x16x16xbf16>
    %41 = vector.extract_strided_slice %15 {offsets = [0, 0, 48], sizes = [1, 16, 16], strides = [1, 1, 1]} : vector<1x16x96xf32> to vector<1x16x16xf32>
    %42 = arith.truncf %41 : vector<1x16x16xf32> to vector<1x16x16xbf16>
    %43 = vector.extract_strided_slice %15 {offsets = [0, 0, 80], sizes = [1, 16, 16], strides = [1, 1, 1]} : vector<1x16x96xf32> to vector<1x16x16xf32>
    %44 = arith.truncf %43 : vector<1x16x16xf32> to vector<1x16x16xbf16>
    "tpu.trace_start"() <{level = 10 : i32, message = "bqd,bkd->bqk"}> : () -> ()
    %cst_20 = arith.constant dense<0.000000e+00> : vector<1x16x16xf32>
    %45 = tpu.matmul %40, %42, %cst_20 {dimension_numbers = #tpu.dot_dimension_numbers<[2], [2], [1], [1], [0, 0, 0, 1, 1, 1], [0], [0]>} : vector<1x16x16xbf16>, vector<1x16x16xbf16>, vector<1x16x16xf32> -> vector<1x16x16xf32>
    "tpu.trace_stop"() : () -> ()
    %cst_21 = arith.constant 2.500000e-01 : f32
    %46 = vector.broadcast %cst_21 : f32 to vector<1x16x16xf32>
    %47 = arith.mulf %45, %46 : vector<1x16x16xf32>
    %48 = vector.broadcast %4 : vector<1x1x16xf32> to vector<1x16x16xf32>
    %49 = arith.addf %47, %48 : vector<1x16x16xf32>
    %cst_22 = arith.constant dense<0xFF800000> : vector<1x16xf32>
    %50 = vector.multi_reduction <maximumf>, %49, %cst_22 [2] : vector<1x16x16xf32> to vector<1x16xf32>
    %51 = vector.shape_cast %50 : vector<1x16xf32> to vector<1x16x1xf32>
    %52 = vector.broadcast %51 : vector<1x16x1xf32> to vector<1x16x16xf32>
    %53 = arith.subf %49, %52 : vector<1x16x16xf32>
    %54 = math.exp %53 : vector<1x16x16xf32>
    %cst_23 = arith.constant dense<0.000000e+00> : vector<1x16xf32>
    %55 = vector.multi_reduction <add>, %54, %cst_23 [2] : vector<1x16x16xf32> to vector<1x16xf32>
    %56 = vector.shape_cast %55 : vector<1x16xf32> to vector<1x16x1xf32>
    %57 = tpu.reciprocal %56 {approx = true} : vector<1x16x1xf32> -> vector<1x16x1xf32>
    %58 = vector.broadcast %57 : vector<1x16x1xf32> to vector<1x16x16xf32>
    %59 = arith.mulf %54, %58 : vector<1x16x16xf32>
    %60 = arith.truncf %59 : vector<1x16x16xf32> to vector<1x16x16xbf16>
    "tpu.trace_start"() <{level = 10 : i32, message = "bqk,bkd->bqd"}> : () -> ()
    %cst_24 = arith.constant dense<0.000000e+00> : vector<1x16x16xf32>
    %61 = tpu.matmul %60, %44, %cst_24 {dimension_numbers = #tpu.dot_dimension_numbers<[2], [1], [1], [2], [0, 0, 0, 1, 1, 2], [0], [0]>} : vector<1x16x16xbf16>, vector<1x16x16xbf16>, vector<1x16x16xf32> -> vector<1x16x16xf32>
    "tpu.trace_stop"() : () -> ()
    %62 = tpu.concatenate %38, %61 in 2 : vector<1x16x16xf32>, vector<1x16x16xf32> -> vector<1x16x32xf32>
    %63 = arith.truncf %62 : vector<1x16x32xf32> to vector<1x16x32xbf16>
    %64 = vector.shape_cast %63 : vector<1x16x32xbf16> to vector<16x32xbf16>
    %c0_25 = arith.constant 0 : index
    %c0_26 = arith.constant 0 : index
    %c0_27 = arith.constant 0 : index
    %65 = vector.load %arg7[%c0_25, %c0_26, %c0_27] : memref<1x32x32xbf16, #tpu.memory_space<vmem>>, vector<1x32x32xbf16>
    %66 = vector.shape_cast %65 : vector<1x32x32xbf16> to vector<32x32xbf16>
    %cst_28 = arith.constant dense<0.000000e+00> : vector<16x32xf32>
    %67 = tpu.matmul %64, %66, %cst_28 {dimension_numbers = #tpu.dot_dimension_numbers<[1], [0], [0], [1], [0, 0, 1, 1], [], []>} : vector<16x32xbf16>, vector<32x32xbf16>, vector<16x32xf32> -> vector<16x32xf32>
    %68 = vector.shape_cast %67 : vector<16x32xf32> to vector<1x16x32xf32>
    %c0_29 = arith.constant 0 : index
    %c0_30 = arith.constant 0 : index
    %c0_31 = arith.constant 0 : index
    %69 = vector.load %arg8[%c0_29, %c0_30, %c0_31] : memref<1x1x32xf32, #tpu.memory_space<vmem>>, vector<1x1x32xf32>
    %70 = vector.shape_cast %69 : vector<1x1x32xf32> to vector<1x32xf32>
    %71 = vector.shape_cast %70 : vector<1x32xf32> to vector<1x1x32xf32>
    %72 = vector.broadcast %71 : vector<1x1x32xf32> to vector<1x16x32xf32>
    %73 = arith.addf %68, %72 : vector<1x16x32xf32>
    %c0_32 = arith.constant 0 : index
    %c0_33 = arith.constant 0 : index
    %c0_34 = arith.constant 0 : index
    %74 = vector.load %arg9[%c0_32, %c0_33, %c0_34] : memref<1x1x32xf32, #tpu.memory_space<vmem>>, vector<1x1x32xf32>
    %75 = vector.shape_cast %74 : vector<1x1x32xf32> to vector<1x32xf32>
    %c0_35 = arith.constant 0 : index
    %c0_36 = arith.constant 0 : index
    %c0_37 = arith.constant 0 : index
    %76 = vector.load %arg10[%c0_35, %c0_36, %c0_37] : memref<1x1x32xf32, #tpu.memory_space<vmem>>, vector<1x1x32xf32>
    %77 = vector.shape_cast %76 : vector<1x1x32xf32> to vector<1x32xf32>
    %78 = arith.addf %73, %3 : vector<1x16x32xf32>
    %cst_38 = arith.constant dense<0.000000e+00> : vector<1x16xf32>
    %79 = vector.multi_reduction <add>, %78, %cst_38 [2] : vector<1x16x32xf32> to vector<1x16xf32>
    %80 = vector.shape_cast %79 : vector<1x16xf32> to vector<1x16x1xf32>
    %cst_39 = arith.constant 3.200000e+01 : f32
    %81 = vector.broadcast %cst_39 : f32 to vector<1x16x1xf32>
    %82 = arith.divf %80, %81 : vector<1x16x1xf32>
    %83 = vector.broadcast %82 : vector<1x16x1xf32> to vector<1x16x32xf32>
    %84 = arith.subf %78, %83 : vector<1x16x32xf32>
    %85 = arith.mulf %84, %84 : vector<1x16x32xf32>
    %cst_40 = arith.constant dense<0.000000e+00> : vector<1x16xf32>
    %86 = vector.multi_reduction <add>, %85, %cst_40 [2] : vector<1x16x32xf32> to vector<1x16xf32>
    %87 = vector.shape_cast %86 : vector<1x16xf32> to vector<1x16x1xf32>
    %cst_41 = arith.constant 3.200000e+01 : f32
    %88 = vector.broadcast %cst_41 : f32 to vector<1x16x1xf32>
    %89 = arith.divf %87, %88 : vector<1x16x1xf32>
    %cst_42 = arith.constant 9.99999974E-6 : f32
    %90 = vector.broadcast %cst_42 : f32 to vector<1x16x1xf32>
    %91 = arith.addf %89, %90 : vector<1x16x1xf32>
    %92 = math.rsqrt %91 : vector<1x16x1xf32>
    %93 = vector.broadcast %92 : vector<1x16x1xf32> to vector<1x16x32xf32>
    %94 = arith.mulf %84, %93 : vector<1x16x32xf32>
    %95 = vector.shape_cast %75 : vector<1x32xf32> to vector<1x1x32xf32>
    %96 = vector.broadcast %95 : vector<1x1x32xf32> to vector<1x16x32xf32>
    %97 = arith.mulf %94, %96 : vector<1x16x32xf32>
    %98 = vector.shape_cast %77 : vector<1x32xf32> to vector<1x1x32xf32>
    %99 = vector.broadcast %98 : vector<1x1x32xf32> to vector<1x16x32xf32>
    %100 = arith.addf %97, %99 : vector<1x16x32xf32>
    %101 = vector.broadcast %5 : vector<1x16x1xf32> to vector<1x16x32xf32>
    %102 = arith.mulf %100, %101 : vector<1x16x32xf32>
    %c0_43 = arith.constant 0 : index
    %c0_44 = arith.constant 0 : index
    %c0_45 = arith.constant 0 : index
    %103 = vector.load %arg12[%c0_43, %c0_44, %c0_45] : memref<1x1x128xf32, #tpu.memory_space<vmem>>, vector<1x1x128xf32>
    %104 = vector.shape_cast %103 : vector<1x1x128xf32> to vector<1x128xf32>
    %105 = arith.truncf %102 : vector<1x16x32xf32> to vector<1x16x32xbf16>
    %106 = vector.shape_cast %105 : vector<1x16x32xbf16> to vector<16x32xbf16>
    %107 = tpu.iota {dimensions = array<i32: 1>} : vector<1x16x1xi32>
    %cst_46 = arith.constant 0.000000e+00 : f32
    %108 = vector.broadcast %cst_46 : f32 to vector<1x16x128xf32>
    %c0_47 = arith.constant 0 : index
    %c0_48 = arith.constant 0 : index
    %c0_49 = arith.constant 0 : index
    %c0_50 = arith.constant 0 : index
    %109 = vector.load %arg11[%c0_47, %c0_48, %c0_49, %c0_50] : memref<1x3x32x128xbf16, #tpu.memory_space<vmem>>, vector<1x1x32x128xbf16>
    %110 = vector.shape_cast %109 : vector<1x1x32x128xbf16> to vector<32x128xbf16>
    %cst_51 = arith.constant dense<0.000000e+00> : vector<16x128xf32>
    %111 = tpu.matmul %106, %110, %cst_51 {dimension_numbers = #tpu.dot_dimension_numbers<[1], [0], [0], [1], [0, 0, 1, 1], [], []>} : vector<16x32xbf16>, vector<32x128xbf16>, vector<16x128xf32> -> vector<16x128xf32>
    %112 = vector.shape_cast %111 : vector<16x128xf32> to vector<1x16x128xf32>
    %c1_i32 = arith.constant 1 : i32
    %113 = tpu.dynamic_rotate %112 by %c1_i32 dim 1 : vector<1x16x128xf32>, i32 -> vector<1x16x128xf32>
    %c1_i32_52 = arith.constant 1 : i32
    %114 = vector.broadcast %c1_i32_52 : i32 to vector<1x16x1xi32>
    %115 = arith.cmpi sge, %107, %114 : vector<1x16x1xi32>
    %c17_i32 = arith.constant 17 : i32
    %116 = vector.broadcast %c17_i32 : i32 to vector<1x16x1xi32>
    %117 = arith.cmpi slt, %107, %116 : vector<1x16x1xi32>
    %118 = arith.andi %115, %117 : vector<1x16x1xi1>
    %119 = arith.extui %118 : vector<1x16x1xi1> to vector<1x16x1xi32>
    %120 = arith.sitofp %119 : vector<1x16x1xi32> to vector<1x16x1xf32>
    %121 = vector.broadcast %120 : vector<1x16x1xf32> to vector<1x16x128xf32>
    %122 = arith.mulf %113, %121 : vector<1x16x128xf32>
    %123 = arith.addf %108, %122 : vector<1x16x128xf32>
    %c0_53 = arith.constant 0 : index
    %c1 = arith.constant 1 : index
    %c0_54 = arith.constant 0 : index
    %c0_55 = arith.constant 0 : index
    %124 = vector.load %arg11[%c0_53, %c1, %c0_54, %c0_55] : memref<1x3x32x128xbf16, #tpu.memory_space<vmem>>, vector<1x1x32x128xbf16>
    %125 = vector.shape_cast %124 : vector<1x1x32x128xbf16> to vector<32x128xbf16>
    %cst_56 = arith.constant dense<0.000000e+00> : vector<16x128xf32>
    %126 = tpu.matmul %106, %125, %cst_56 {dimension_numbers = #tpu.dot_dimension_numbers<[1], [0], [0], [1], [0, 0, 1, 1], [], []>} : vector<16x32xbf16>, vector<32x128xbf16>, vector<16x128xf32> -> vector<16x128xf32>
    %127 = vector.shape_cast %126 : vector<16x128xf32> to vector<1x16x128xf32>
    %128 = arith.addf %123, %127 : vector<1x16x128xf32>
    %c0_57 = arith.constant 0 : index
    %c2 = arith.constant 2 : index
    %c0_58 = arith.constant 0 : index
    %c0_59 = arith.constant 0 : index
    %129 = vector.load %arg11[%c0_57, %c2, %c0_58, %c0_59] : memref<1x3x32x128xbf16, #tpu.memory_space<vmem>>, vector<1x1x32x128xbf16>
    %130 = vector.shape_cast %129 : vector<1x1x32x128xbf16> to vector<32x128xbf16>
    %cst_60 = arith.constant dense<0.000000e+00> : vector<16x128xf32>
    %131 = tpu.matmul %106, %130, %cst_60 {dimension_numbers = #tpu.dot_dimension_numbers<[1], [0], [0], [1], [0, 0, 1, 1], [], []>} : vector<16x32xbf16>, vector<32x128xbf16>, vector<16x128xf32> -> vector<16x128xf32>
    %132 = vector.shape_cast %131 : vector<16x128xf32> to vector<1x16x128xf32>
    %c15_i32 = arith.constant 15 : i32
    %133 = tpu.dynamic_rotate %132 by %c15_i32 dim 1 : vector<1x16x128xf32>, i32 -> vector<1x16x128xf32>
    %c-1_i32 = arith.constant -1 : i32
    %134 = vector.broadcast %c-1_i32 : i32 to vector<1x16x1xi32>
    %135 = arith.cmpi sge, %107, %134 : vector<1x16x1xi32>
    %c15_i32_61 = arith.constant 15 : i32
    %136 = vector.broadcast %c15_i32_61 : i32 to vector<1x16x1xi32>
    %137 = arith.cmpi slt, %107, %136 : vector<1x16x1xi32>
    %138 = arith.andi %135, %137 : vector<1x16x1xi1>
    %139 = arith.extui %138 : vector<1x16x1xi1> to vector<1x16x1xi32>
    %140 = arith.sitofp %139 : vector<1x16x1xi32> to vector<1x16x1xf32>
    %141 = vector.broadcast %140 : vector<1x16x1xf32> to vector<1x16x128xf32>
    %142 = arith.mulf %133, %141 : vector<1x16x128xf32>
    %143 = arith.addf %128, %142 : vector<1x16x128xf32>
    %144 = vector.shape_cast %104 : vector<1x128xf32> to vector<1x1x128xf32>
    %145 = vector.broadcast %144 : vector<1x1x128xf32> to vector<1x16x128xf32>
    %146 = arith.addf %143, %145 : vector<1x16x128xf32>
    %cst_62 = arith.constant 0.000000e+00 : f32
    %147 = vector.broadcast %cst_62 : f32 to vector<1x16x128xf32>
    %148 = arith.maximumf %146, %147 : vector<1x16x128xf32>
    %c0_63 = arith.constant 0 : index
    %c0_64 = arith.constant 0 : index
    %c0_65 = arith.constant 0 : index
    %149 = vector.load %arg14[%c0_63, %c0_64, %c0_65] : memref<1x1x32xf32, #tpu.memory_space<vmem>>, vector<1x1x32xf32>
    %150 = vector.shape_cast %149 : vector<1x1x32xf32> to vector<1x32xf32>
    %151 = arith.truncf %148 : vector<1x16x128xf32> to vector<1x16x128xbf16>
    %152 = vector.shape_cast %151 : vector<1x16x128xbf16> to vector<16x128xbf16>
    %153 = tpu.iota {dimensions = array<i32: 1>} : vector<1x16x1xi32>
    %cst_66 = arith.constant 0.000000e+00 : f32
    %154 = vector.broadcast %cst_66 : f32 to vector<1x16x32xf32>
    %c0_67 = arith.constant 0 : index
    %c0_68 = arith.constant 0 : index
    %c0_69 = arith.constant 0 : index
    %c0_70 = arith.constant 0 : index
    %155 = vector.load %arg13[%c0_67, %c0_68, %c0_69, %c0_70] : memref<1x3x128x32xbf16, #tpu.memory_space<vmem>>, vector<1x1x128x32xbf16>
    %156 = vector.shape_cast %155 : vector<1x1x128x32xbf16> to vector<128x32xbf16>
    %cst_71 = arith.constant dense<0.000000e+00> : vector<16x32xf32>
    %157 = tpu.matmul %152, %156, %cst_71 {dimension_numbers = #tpu.dot_dimension_numbers<[1], [0], [0], [1], [0, 0, 1, 1], [], []>} : vector<16x128xbf16>, vector<128x32xbf16>, vector<16x32xf32> -> vector<16x32xf32>
    %158 = vector.shape_cast %157 : vector<16x32xf32> to vector<1x16x32xf32>
    %c1_i32_72 = arith.constant 1 : i32
    %159 = tpu.dynamic_rotate %158 by %c1_i32_72 dim 1 : vector<1x16x32xf32>, i32 -> vector<1x16x32xf32>
    %c1_i32_73 = arith.constant 1 : i32
    %160 = vector.broadcast %c1_i32_73 : i32 to vector<1x16x1xi32>
    %161 = arith.cmpi sge, %153, %160 : vector<1x16x1xi32>
    %c17_i32_74 = arith.constant 17 : i32
    %162 = vector.broadcast %c17_i32_74 : i32 to vector<1x16x1xi32>
    %163 = arith.cmpi slt, %153, %162 : vector<1x16x1xi32>
    %164 = arith.andi %161, %163 : vector<1x16x1xi1>
    %165 = arith.extui %164 : vector<1x16x1xi1> to vector<1x16x1xi32>
    %166 = arith.sitofp %165 : vector<1x16x1xi32> to vector<1x16x1xf32>
    %167 = vector.broadcast %166 : vector<1x16x1xf32> to vector<1x16x32xf32>
    %168 = arith.mulf %159, %167 : vector<1x16x32xf32>
    %169 = arith.addf %154, %168 : vector<1x16x32xf32>
    %c0_75 = arith.constant 0 : index
    %c1_76 = arith.constant 1 : index
    %c0_77 = arith.constant 0 : index
    %c0_78 = arith.constant 0 : index
    %170 = vector.load %arg13[%c0_75, %c1_76, %c0_77, %c0_78] : memref<1x3x128x32xbf16, #tpu.memory_space<vmem>>, vector<1x1x128x32xbf16>
    %171 = vector.shape_cast %170 : vector<1x1x128x32xbf16> to vector<128x32xbf16>
    %cst_79 = arith.constant dense<0.000000e+00> : vector<16x32xf32>
    %172 = tpu.matmul %152, %171, %cst_79 {dimension_numbers = #tpu.dot_dimension_numbers<[1], [0], [0], [1], [0, 0, 1, 1], [], []>} : vector<16x128xbf16>, vector<128x32xbf16>, vector<16x32xf32> -> vector<16x32xf32>
    %173 = vector.shape_cast %172 : vector<16x32xf32> to vector<1x16x32xf32>
    %174 = arith.addf %169, %173 : vector<1x16x32xf32>
    %c0_80 = arith.constant 0 : index
    %c2_81 = arith.constant 2 : index
    %c0_82 = arith.constant 0 : index
    %c0_83 = arith.constant 0 : index
    %175 = vector.load %arg13[%c0_80, %c2_81, %c0_82, %c0_83] : memref<1x3x128x32xbf16, #tpu.memory_space<vmem>>, vector<1x1x128x32xbf16>
    %176 = vector.shape_cast %175 : vector<1x1x128x32xbf16> to vector<128x32xbf16>
    %cst_84 = arith.constant dense<0.000000e+00> : vector<16x32xf32>
    %177 = tpu.matmul %152, %176, %cst_84 {dimension_numbers = #tpu.dot_dimension_numbers<[1], [0], [0], [1], [0, 0, 1, 1], [], []>} : vector<16x128xbf16>, vector<128x32xbf16>, vector<16x32xf32> -> vector<16x32xf32>
    %178 = vector.shape_cast %177 : vector<16x32xf32> to vector<1x16x32xf32>
    %c15_i32_85 = arith.constant 15 : i32
    %179 = tpu.dynamic_rotate %178 by %c15_i32_85 dim 1 : vector<1x16x32xf32>, i32 -> vector<1x16x32xf32>
    %c-1_i32_86 = arith.constant -1 : i32
    %180 = vector.broadcast %c-1_i32_86 : i32 to vector<1x16x1xi32>
    %181 = arith.cmpi sge, %153, %180 : vector<1x16x1xi32>
    %c15_i32_87 = arith.constant 15 : i32
    %182 = vector.broadcast %c15_i32_87 : i32 to vector<1x16x1xi32>
    %183 = arith.cmpi slt, %153, %182 : vector<1x16x1xi32>
    %184 = arith.andi %181, %183 : vector<1x16x1xi1>
    %185 = arith.extui %184 : vector<1x16x1xi1> to vector<1x16x1xi32>
    %186 = arith.sitofp %185 : vector<1x16x1xi32> to vector<1x16x1xf32>
    %187 = vector.broadcast %186 : vector<1x16x1xf32> to vector<1x16x32xf32>
    %188 = arith.mulf %179, %187 : vector<1x16x32xf32>
    %189 = arith.addf %174, %188 : vector<1x16x32xf32>
    %190 = vector.shape_cast %150 : vector<1x32xf32> to vector<1x1x32xf32>
    %191 = vector.broadcast %190 : vector<1x1x32xf32> to vector<1x16x32xf32>
    %192 = arith.addf %189, %191 : vector<1x16x32xf32>
    %c0_88 = arith.constant 0 : index
    %c0_89 = arith.constant 0 : index
    %c0_90 = arith.constant 0 : index
    %193 = vector.load %arg15[%c0_88, %c0_89, %c0_90] : memref<1x1x32xf32, #tpu.memory_space<vmem>>, vector<1x1x32xf32>
    %194 = vector.shape_cast %193 : vector<1x1x32xf32> to vector<1x32xf32>
    %c0_91 = arith.constant 0 : index
    %c0_92 = arith.constant 0 : index
    %c0_93 = arith.constant 0 : index
    %195 = vector.load %arg16[%c0_91, %c0_92, %c0_93] : memref<1x1x32xf32, #tpu.memory_space<vmem>>, vector<1x1x32xf32>
    %196 = vector.shape_cast %195 : vector<1x1x32xf32> to vector<1x32xf32>
    %197 = arith.addf %192, %102 : vector<1x16x32xf32>
    %cst_94 = arith.constant dense<0.000000e+00> : vector<1x16xf32>
    %198 = vector.multi_reduction <add>, %197, %cst_94 [2] : vector<1x16x32xf32> to vector<1x16xf32>
    %199 = vector.shape_cast %198 : vector<1x16xf32> to vector<1x16x1xf32>
    %cst_95 = arith.constant 3.200000e+01 : f32
    %200 = vector.broadcast %cst_95 : f32 to vector<1x16x1xf32>
    %201 = arith.divf %199, %200 : vector<1x16x1xf32>
    %202 = vector.broadcast %201 : vector<1x16x1xf32> to vector<1x16x32xf32>
    %203 = arith.subf %197, %202 : vector<1x16x32xf32>
    %204 = arith.mulf %203, %203 : vector<1x16x32xf32>
    %cst_96 = arith.constant dense<0.000000e+00> : vector<1x16xf32>
    %205 = vector.multi_reduction <add>, %204, %cst_96 [2] : vector<1x16x32xf32> to vector<1x16xf32>
    %206 = vector.shape_cast %205 : vector<1x16xf32> to vector<1x16x1xf32>
    %cst_97 = arith.constant 3.200000e+01 : f32
    %207 = vector.broadcast %cst_97 : f32 to vector<1x16x1xf32>
    %208 = arith.divf %206, %207 : vector<1x16x1xf32>
    %cst_98 = arith.constant 9.99999974E-6 : f32
    %209 = vector.broadcast %cst_98 : f32 to vector<1x16x1xf32>
    %210 = arith.addf %208, %209 : vector<1x16x1xf32>
    %211 = math.rsqrt %210 : vector<1x16x1xf32>
    %212 = vector.broadcast %211 : vector<1x16x1xf32> to vector<1x16x32xf32>
    %213 = arith.mulf %203, %212 : vector<1x16x32xf32>
    %214 = vector.shape_cast %194 : vector<1x32xf32> to vector<1x1x32xf32>
    %215 = vector.broadcast %214 : vector<1x1x32xf32> to vector<1x16x32xf32>
    %216 = arith.mulf %213, %215 : vector<1x16x32xf32>
    %217 = vector.shape_cast %196 : vector<1x32xf32> to vector<1x1x32xf32>
    %218 = vector.broadcast %217 : vector<1x1x32xf32> to vector<1x16x32xf32>
    %219 = arith.addf %216, %218 : vector<1x16x32xf32>
    %220 = vector.broadcast %5 : vector<1x16x1xf32> to vector<1x16x32xf32>
    %221 = arith.mulf %219, %220 : vector<1x16x32xf32>
    %c0_99 = arith.constant 0 : index
    %c0_100 = arith.constant 0 : index
    %c0_101 = arith.constant 0 : index
    %222 = vector.load %arg17[%c0_99, %c0_100, %c0_101] : memref<1x16x32xf32, #tpu.memory_space<vmem>>, vector<1x16x32xf32>
    tpu.vector_store %arg17[%c0_99, %c0_100, %c0_101], %221 {strides = array<i32>} : memref<1x16x32xf32, #tpu.memory_space<vmem>>, vector<1x16x32xf32>,
    return
  }
  func.func @transform_0(%arg0: i32, %arg1: i32) -> (i32, i32, i32) {
    %c0_i32 = arith.constant 0 : i32
    %c0_i32_0 = arith.constant 0 : i32
    %c0_i32_1 = arith.constant 0 : i32
    return %arg0, %c0_i32, %c0_i32_0 : i32, i32, i32
  }
  func.func @transform_1(%arg0: i32, %arg1: i32) -> (i32, i32, i32) {
    %c0_i32 = arith.constant 0 : i32
    %c0_i32_0 = arith.constant 0 : i32
    %c0_i32_1 = arith.constant 0 : i32
    return %arg0, %c0_i32, %c0_i32_0 : i32, i32, i32
  }
  func.func @transform_2(%arg0: i32, %arg1: i32) -> (i32, i32, i32) {
    %c0_i32 = arith.constant 0 : i32
    %c0_i32_0 = arith.constant 0 : i32
    %c0_i32_1 = arith.constant 0 : i32
    return %arg0, %c0_i32, %c0_i32_0 : i32, i32, i32
  }
  func.func @transform_3(%arg0: i32, %arg1: i32) -> (i32, i32, i32) {
    %c0_i32 = arith.constant 0 : i32
    %c0_i32_0 = arith.constant 0 : i32
    %c0_i32_1 = arith.constant 0 : i32
    return %arg1, %c0_i32, %c0_i32_0 : i32, i32, i32
  }
  func.func @transform_4(%arg0: i32, %arg1: i32) -> (i32, i32, i32) {
    %c0_i32 = arith.constant 0 : i32
    %c0_i32_0 = arith.constant 0 : i32
    %c0_i32_1 = arith.constant 0 : i32
    return %arg1, %c0_i32, %c0_i32_0 : i32, i32, i32
  }
  func.func @transform_5(%arg0: i32, %arg1: i32) -> (i32, i32, i32) {
    %c0_i32 = arith.constant 0 : i32
    %c0_i32_0 = arith.constant 0 : i32
    %c0_i32_1 = arith.constant 0 : i32
    return %arg1, %c0_i32, %c0_i32_0 : i32, i32, i32
  }
  func.func @transform_6(%arg0: i32, %arg1: i32) -> (i32, i32, i32) {
    %c0_i32 = arith.constant 0 : i32
    %c0_i32_0 = arith.constant 0 : i32
    %c0_i32_1 = arith.constant 0 : i32
    return %arg1, %c0_i32, %c0_i32_0 : i32, i32, i32
  }
  func.func @transform_7(%arg0: i32, %arg1: i32) -> (i32, i32, i32) {
    %c0_i32 = arith.constant 0 : i32
    %c0_i32_0 = arith.constant 0 : i32
    %c0_i32_1 = arith.constant 0 : i32
    return %arg1, %c0_i32, %c0_i32_0 : i32, i32, i32
  }
  func.func @transform_8(%arg0: i32, %arg1: i32) -> (i32, i32, i32) {
    %c0_i32 = arith.constant 0 : i32
    %c0_i32_0 = arith.constant 0 : i32
    %c0_i32_1 = arith.constant 0 : i32
    return %arg1, %c0_i32, %c0_i32_0 : i32, i32, i32
  }
  func.func @transform_9(%arg0: i32, %arg1: i32) -> (i32, i32, i32, i32) {
    %c0_i32 = arith.constant 0 : i32
    %c0_i32_0 = arith.constant 0 : i32
    %c0_i32_1 = arith.constant 0 : i32
    %c0_i32_2 = arith.constant 0 : i32
    return %arg1, %c0_i32, %c0_i32_0, %c0_i32_1 : i32, i32, i32, i32
  }
  func.func @transform_10(%arg0: i32, %arg1: i32) -> (i32, i32, i32) {
    %c0_i32 = arith.constant 0 : i32
    %c0_i32_0 = arith.constant 0 : i32
    %c0_i32_1 = arith.constant 0 : i32
    return %arg1, %c0_i32, %c0_i32_0 : i32, i32, i32
  }
  func.func @transform_11(%arg0: i32, %arg1: i32) -> (i32, i32, i32, i32) {
    %c0_i32 = arith.constant 0 : i32
    %c0_i32_0 = arith.constant 0 : i32
    %c0_i32_1 = arith.constant 0 : i32
    %c0_i32_2 = arith.constant 0 : i32
    return %arg1, %c0_i32, %c0_i32_0, %c0_i32_1 : i32, i32, i32, i32
  }
  func.func @transform_12(%arg0: i32, %arg1: i32) -> (i32, i32, i32) {
    %c0_i32 = arith.constant 0 : i32
    %c0_i32_0 = arith.constant 0 : i32
    %c0_i32_1 = arith.constant 0 : i32
    return %arg1, %c0_i32, %c0_i32_0 : i32, i32, i32
  }
  func.func @transform_13(%arg0: i32, %arg1: i32) -> (i32, i32, i32) {
    %c0_i32 = arith.constant 0 : i32
    %c0_i32_0 = arith.constant 0 : i32
    %c0_i32_1 = arith.constant 0 : i32
    return %arg1, %c0_i32, %c0_i32_0 : i32, i32, i32
  }
  func.func @transform_14(%arg0: i32, %arg1: i32) -> (i32, i32, i32) {
    %c0_i32 = arith.constant 0 : i32
    %c0_i32_0 = arith.constant 0 : i32
    %c0_i32_1 = arith.constant 0 : i32
    return %arg1, %c0_i32, %c0_i32_0 : i32, i32, i32
  }
  func.func @transform_15(%arg0: i32, %arg1: i32) -> (i32, i32, i32) {
    %c0_i32 = arith.constant 0 : i32
    %c0_i32_0 = arith.constant 0 : i32
    %c0_i32_1 = arith.constant 0 : i32
    return %arg0, %c0_i32, %c0_i32_0 : i32, i32, i32
  }
}

</mosaic_0001>

<llo_original>
// kernel: tpu_custom_call.1
$region0: #{tpu_custom_call.1}
  #allocation0 [shape = 'u32[]', space=smem, size = 0x4, offset = 0x4, fixed_abs, tag = 'smem constant byte address 0x4 - core index']
  #allocation1 [shape = 'u32[144,128]{1,0:T(1,128)}', space=vmem, size = 0x12000, scoped, tag = 'internal scratch']
  %s0 = inlined_call_operand.vmem [shape: f32[2,16,32], index: 0, kind: input, shape index: {}]
  %s1 = inlined_call_operand.vmem [shape: f32[2,1,16], index: 1, kind: input, shape index: {}]
  %s2 = inlined_call_operand.vmem [shape: f32[2,16,1], index: 2, kind: input, shape index: {}]
  %s3 = inlined_call_operand.vmem [shape: bf16[2,32,96], index: 3, kind: input, shape index: {}]
  %s4 = inlined_call_operand.vmem [shape: f32[2,1,96], index: 4, kind: input, shape index: {}]
  %s5 = inlined_call_operand.vmem [shape: bf16[2,32,32], index: 5, kind: input, shape index: {}]
  %s6 = inlined_call_operand.vmem [shape: f32[2,1,32], index: 6, kind: input, shape index: {}]
  %s7 = inlined_call_operand.vmem [shape: f32[2,1,32], index: 7, kind: input, shape index: {}]
  %s8 = inlined_call_operand.vmem [shape: f32[2,1,32], index: 8, kind: input, shape index: {}]
  %s9 = inlined_call_operand.vmem [shape: bf16[2,3,32,128], index: 9, kind: input, shape index: {}]
  %s10 = inlined_call_operand.vmem [shape: f32[2,1,128], index: 10, kind: input, shape index: {}]
  %s11 = inlined_call_operand.vmem [shape: bf16[2,3,128,32], index: 11, kind: input, shape index: {}]
  %s12 = inlined_call_operand.vmem [shape: f32[2,1,32], index: 12, kind: input, shape index: {}]
  %s13 = inlined_call_operand.vmem [shape: f32[2,1,32], index: 13, kind: input, shape index: {}]
  %s14 = inlined_call_operand.vmem [shape: f32[2,1,32], index: 14, kind: input, shape index: {}]
  %s15 = inlined_call_operand.hbm [shape: f32[2,16,32], index: 15, kind: output, shape index: {}]
  %s16 = sld [smem:[#allocation0]]
  $region97: #{tpu_custom_call.1} parent=0
    _
  %s18 = ssub.s32 1, %s16
  %s19 = scalar_select 0, %s18, %s16
  $region1: #{tpu_custom_call.1} parent=0
    #allocation2 [shape = 'u8[16384]{0}', space=vmem, size = 0x4000, scoped, tag = 'output window, operand 0']
    #allocation3 [shape = 's32[2]{0}', space=sflag, size = 0x8, scoped, tag = 'scoped memory for tpu_custom_call.1']
    %20 = vsyncpa [#allocation3], 0
    %s21 = scalar_lea.sflag [#allocation3], 1
    %22 = vsyncpa %s21, 0
    loop: start=0, step=1, limit=6
    $region2: #{tpu_custom_call.1} parent=1 // loop_pre_header
      _
    $region3: #{tpu_custom_call.1} parent=1 // loop_header
      %s24 = sphi 0, %s28
      %p25 = scmp.ge.s32.totalorder %s24, 6
      %s31 = sphi 0, %s43
      %s32 = sphi 0, %s39
      %s33 = sphi 0, %s31
      %s34 = sphi 0, %s32
      %s35 = sphi 0, %s33
      %s36 = sphi 0, %s34
      %s46 = sphi 0, %s48
      %s49 = sphi 0, %s46
      %s50 = sphi 0, %s49
      %s66 = sphi 0, %s50
      %s72 = sphi 0, %s74
      %s75 = sphi 0, %s72
      %s76 = sphi 0, %s75
      %s92 = sphi 0, %s76
      %s98 = sphi 0, %s100
      %s101 = sphi 0, %s98
      %s102 = sphi 0, %s101
      %s118 = sphi 0, %s102
      %s124 = sphi 0, %s126
      %s127 = sphi 0, %s124
      %s128 = sphi 0, %s127
      %s144 = sphi 0, %s128
      %s150 = sphi 0, %s152
      %s153 = sphi 0, %s150
      %s154 = sphi 0, %s153
      %s170 = sphi 0, %s154
      %s176 = sphi 0, %s178
      %s179 = sphi 0, %s176
      %s180 = sphi 0, %s179
      %s196 = sphi 0, %s180
      %s202 = sphi 0, %s204
      %s205 = sphi 0, %s202
      %s206 = sphi 0, %s205
      %s222 = sphi 0, %s206
      %s228 = sphi 0, %s230
      %s231 = sphi 0, %s228
      %s232 = sphi 0, %s231
      %s248 = sphi 0, %s232
      %s254 = sphi 0, %s256
      %s257 = sphi 0, %s254
      %s258 = sphi 0, %s257
      %s274 = sphi 0, %s258
      %s280 = sphi 0, %s282
      %s283 = sphi 0, %s280
      %s284 = sphi 0, %s283
      %s300 = sphi 0, %s284
      %s306 = sphi 0, %s308
      %s309 = sphi 0, %s306
      %s310 = sphi 0, %s309
      %s326 = sphi 0, %s310
      %s332 = sphi 0, %s334
      %s335 = sphi 0, %s332
      %s336 = sphi 0, %s335
      %s352 = sphi 0, %s336
      %s358 = sphi 0, %s360
      %s361 = sphi 0, %s358
      %s362 = sphi 0, %s361
      %s378 = sphi 0, %s362
      %s384 = sphi 0, %s386
      %s387 = sphi 0, %s384
      %s388 = sphi 0, %s387
      %s404 = sphi 0, %s388
      %s410 = sphi 0, %s412
      %s413 = sphi 0, %s410
      %s414 = sphi 0, %s413
      %s430 = sphi 0, %s414
      %s436 = sphi 0, %s438
      %s439 = sphi 0, %s436
      %s440 = sphi 0, %s439
      %s456 = sphi 0, %s440
    $region4: #{tpu_custom_call.1} parent=1 // loop_header_branch
      %27 = sbr.rel (%p25) target = $region8
    $region5: #{tpu_custom_call.1} parent=1 // loop_body
      %s29 = ssub.s32 %s24, 1
      %s30 = ssub.s32 %s24, 2
      %s37 = sadd.s32 1, %s32
      %p38 = scmp.ge.s32.totalorder %s37, 2
      %s39 = scalar_select %p38, 0, %s37
      %s40 = sadd.s32 1, %s31
      %s41 = scalar_select %p38, %s40, %s31
      %p42 = scmp.ge.s32.totalorder %s41, 2
      %s43 = scalar_select %p42, 0, %s41
      %s44 = ssub.s32 %s31, %s43
      %p45 = scmp.eq.s32.totalorder %s44, 0
      %s47 = sadd.s32 %s46, 1
      %s48 = scalar_select %p45, %s46, %s47
      %p51 = pneg %p45
      %p52 = scmp.eq.s32.totalorder %s24, 3
      %p53 = por %p51, %p52
      %p54 = scmp.ne.s32.totalorder %s46, %s49
      %p55 = scmp.eq.s32.totalorder %s24, 0
      %p56 = por %p54, %p55
      %p57 = scmp.ne.s32.totalorder %s46, %s49
      %p58 = scmp.eq.s32.totalorder %s29, 3
      %p59 = por %p57, %p58
      %p60 = scmp.ne.s32.totalorder %s49, %s50
      %p61 = scmp.eq.s32.totalorder %s29, 0
      %p62 = por %p60, %p61
      %p63 = scmp.ne.s32.totalorder %s49, %s50
      %p64 = scmp.eq.s32.totalorder %s30, 3
      %p65 = por %p63, %p64
      %p67 = scmp.ne.s32.totalorder %s50, %s66
      %p68 = scmp.eq.s32.totalorder %s30, 0
      %p69 = por %p67, %p68
      %s70 = ssub.s32 %s31, %s43
      %p71 = scmp.eq.s32.totalorder %s70, 0
      %s73 = sadd.s32 %s72, 1
      %s74 = scalar_select %p71, %s72, %s73
      %p77 = pneg %p71
      %p78 = scmp.eq.s32.totalorder %s24, 3
      %p79 = por %p77, %p78
      %p80 = scmp.ne.s32.totalorder %s72, %s75
      %p81 = scmp.eq.s32.totalorder %s24, 0
      %p82 = por %p80, %p81
      %p83 = scmp.ne.s32.totalorder %s72, %s75
      %p84 = scmp.eq.s32.totalorder %s29, 3
      %p85 = por %p83, %p84
      %p86 = scmp.ne.s32.totalorder %s75, %s76
      %p87 = scmp.eq.s32.totalorder %s29, 0
      %p88 = por %p86, %p87
      %p89 = scmp.ne.s32.totalorder %s75, %s76
      %p90 = scmp.eq.s32.totalorder %s30, 3
      %p91 = por %p89, %p90
      %p93 = scmp.ne.s32.totalorder %s76, %s92
      %p94 = scmp.eq.s32.totalorder %s30, 0
      %p95 = por %p93, %p94
      %s96 = ssub.s32 %s31, %s43
      %p97 = scmp.eq.s32.totalorder %s96, 0
      %s99 = sadd.s32 %s98, 1
      %s100 = scalar_select %p97, %s98, %s99
      %p103 = pneg %p97
      %p104 = scmp.eq.s32.totalorder %s24, 3
      %p105 = por %p103, %p104
      %p106 = scmp.ne.s32.totalorder %s98, %s101
      %p107 = scmp.eq.s32.totalorder %s24, 0
      %p108 = por %p106, %p107
      %p109 = scmp.ne.s32.totalorder %s98, %s101
      %p110 = scmp.eq.s32.totalorder %s29, 3
      %p111 = por %p109, %p110
      %p112 = scmp.ne.s32.totalorder %s101, %s102
      %p113 = scmp.eq.s32.totalorder %s29, 0
      %p114 = por %p112, %p113
      %p115 = scmp.ne.s32.totalorder %s101, %s102
      %p116 = scmp.eq.s32.totalorder %s30, 3
      %p117 = por %p115, %p116
      %p119 = scmp.ne.s32.totalorder %s102, %s118
      %p120 = scmp.eq.s32.totalorder %s30, 0
      %p121 = por %p119, %p120
      %s122 = ssub.s32 %s32, %s39
      %p123 = scmp.eq.s32.totalorder %s122, 0
      %s125 = sadd.s32 %s124, 1
      %s126 = scalar_select %p123, %s124, %s125
      %p129 = pneg %p123
      %p130 = scmp.eq.s32.totalorder %s24, 3
      %p131 = por %p129, %p130
      %p132 = scmp.ne.s32.totalorder %s124, %s127
      %p133 = scmp.eq.s32.totalorder %s24, 0
      %p134 = por %p132, %p133
      %p135 = scmp.ne.s32.totalorder %s124, %s127
      %p136 = scmp.eq.s32.totalorder %s29, 3
      %p137 = por %p135, %p136
      %p138 = scmp.ne.s32.totalorder %s127, %s128
      %p139 = scmp.eq.s32.totalorder %s29, 0
      %p140 = por %p138, %p139
      %p141 = scmp.ne.s32.totalorder %s127, %s128
      %p142 = scmp.eq.s32.totalorder %s30, 3
      %p143 = por %p141, %p142
      %p145 = scmp.ne.s32.totalorder %s128, %s144
      %p146 = scmp.eq.s32.totalorder %s30, 0
      %p147 = por %p145, %p146
      %s148 = ssub.s32 %s32, %s39
      %p149 = scmp.eq.s32.totalorder %s148, 0
      %s151 = sadd.s32 %s150, 1
      %s152 = scalar_select %p149, %s150, %s151
      %p155 = pneg %p149
      %p156 = scmp.eq.s32.totalorder %s24, 3
      %p157 = por %p155, %p156
      %p158 = scmp.ne.s32.totalorder %s150, %s153
      %p159 = scmp.eq.s32.totalorder %s24, 0
      %p160 = por %p158, %p159
      %p161 = scmp.ne.s32.totalorder %s150, %s153
      %p162 = scmp.eq.s32.totalorder %s29, 3
      %p163 = por %p161, %p162
      %p164 = scmp.ne.s32.totalorder %s153, %s154
      %p165 = scmp.eq.s32.totalorder %s29, 0
      %p166 = por %p164, %p165
      %p167 = scmp.ne.s32.totalorder %s153, %s154
      %p168 = scmp.eq.s32.totalorder %s30, 3
      %p169 = por %p167, %p168
      %p171 = scmp.ne.s32.totalorder %s154, %s170
      %p172 = scmp.eq.s32.totalorder %s30, 0
      %p173 = por %p171, %p172
      %s174 = ssub.s32 %s32, %s39
      %p175 = scmp.eq.s32.totalorder %s174, 0
      %s177 = sadd.s32 %s176, 1
      %s178 = scalar_select %p175, %s176, %s177
      %p181 = pneg %p175
      %p182 = scmp.eq.s32.totalorder %s24, 3
      %p183 = por %p181, %p182
      %p184 = scmp.ne.s32.totalorder %s176, %s179
      %p185 = scmp.eq.s32.totalorder %s24, 0
      %p186 = por %p184, %p185
      %p187 = scmp.ne.s32.totalorder %s176, %s179
      %p188 = scmp.eq.s32.totalorder %s29, 3
      %p189 = por %p187, %p188
      %p190 = scmp.ne.s32.totalorder %s179, %s180
      %p191 = scmp.eq.s32.totalorder %s29, 0
      %p192 = por %p190, %p191
      %p193 = scmp.ne.s32.totalorder %s179, %s180
      %p194 = scmp.eq.s32.totalorder %s30, 3
      %p195 = por %p193, %p194
      %p197 = scmp.ne.s32.totalorder %s180, %s196
      %p198 = scmp.eq.s32.totalorder %s30, 0
      %p199 = por %p197, %p198
      %s200 = ssub.s32 %s32, %s39
      %p201 = scmp.eq.s32.totalorder %s200, 0
      %s203 = sadd.s32 %s202, 1
      %s204 = scalar_select %p201, %s202, %s203
      %p207 = pneg %p201
      %p208 = scmp.eq.s32.totalorder %s24, 3
      %p209 = por %p207, %p208
      %p210 = scmp.ne.s32.totalorder %s202, %s205
      %p211 = scmp.eq.s32.totalorder %s24, 0
      %p212 = por %p210, %p211
      %p213 = scmp.ne.s32.totalorder %s202, %s205
      %p214 = scmp.eq.s32.totalorder %s29, 3
      %p215 = por %p213, %p214
      %p216 = scmp.ne.s32.totalorder %s205, %s206
      %p217 = scmp.eq.s32.totalorder %s29, 0
      %p218 = por %p216, %p217
      %p219 = scmp.ne.s32.totalorder %s205, %s206
      %p220 = scmp.eq.s32.totalorder %s30, 3
      %p221 = por %p219, %p220
      %p223 = scmp.ne.s32.totalorder %s206, %s222
      %p224 = scmp.eq.s32.totalorder %s30, 0
      %p225 = por %p223, %p224
      %s226 = ssub.s32 %s32, %s39
      %p227 = scmp.eq.s32.totalorder %s226, 0
      %s229 = sadd.s32 %s228, 1
      %s230 = scalar_select %p227, %s228, %s229
      %p233 = pneg %p227
      %p234 = scmp.eq.s32.totalorder %s24, 3
      %p235 = por %p233, %p234
      %p236 = scmp.ne.s32.totalorder %s228, %s231
      %p237 = scmp.eq.s32.totalorder %s24, 0
      %p238 = por %p236, %p237
      %p239 = scmp.ne.s32.totalorder %s228, %s231
      %p240 = scmp.eq.s32.totalorder %s29, 3
      %p241 = por %p239, %p240
      %p242 = scmp.ne.s32.totalorder %s231, %s232
      %p243 = scmp.eq.s32.totalorder %s29, 0
      %p244 = por %p242, %p243
      %p245 = scmp.ne.s32.totalorder %s231, %s232
      %p246 = scmp.eq.s32.totalorder %s30, 3
      %p247 = por %p245, %p246
      %p249 = scmp.ne.s32.totalorder %s232, %s248
      %p250 = scmp.eq.s32.totalorder %s30, 0
      %p251 = por %p249, %p250
      %s252 = ssub.s32 %s32, %s39
      %p253 = scmp.eq.s32.totalorder %s252, 0
      %s255 = sadd.s32 %s254, 1
      %s256 = scalar_select %p253, %s254, %s255
      %p259 = pneg %p253
      %p260 = scmp.eq.s32.totalorder %s24, 3
      %p261 = por %p259, %p260
      %p262 = scmp.ne.s32.totalorder %s254, %s257
      %p263 = scmp.eq.s32.totalorder %s24, 0
      %p264 = por %p262, %p263
      %p265 = scmp.ne.s32.totalorder %s254, %s257
      %p266 = scmp.eq.s32.totalorder %s29, 3
      %p267 = por %p265, %p266
      %p268 = scmp.ne.s32.totalorder %s257, %s258
      %p269 = scmp.eq.s32.totalorder %s29, 0
      %p270 = por %p268, %p269
      %p271 = scmp.ne.s32.totalorder %s257, %s258
      %p272 = scmp.eq.s32.totalorder %s30, 3
      %p273 = por %p271, %p272
      %p275 = scmp.ne.s32.totalorder %s258, %s274
      %p276 = scmp.eq.s32.totalorder %s30, 0
      %p277 = por %p275, %p276
      %s278 = ssub.s32 %s32, %s39
      %p279 = scmp.eq.s32.totalorder %s278, 0
      %s281 = sadd.s32 %s280, 1
      %s282 = scalar_select %p279, %s280, %s281
      %p285 = pneg %p279
      %p286 = scmp.eq.s32.totalorder %s24, 3
      %p287 = por %p285, %p286
      %p288 = scmp.ne.s32.totalorder %s280, %s283
      %p289 = scmp.eq.s32.totalorder %s24, 0
      %p290 = por %p288, %p289
      %p291 = scmp.ne.s32.totalorder %s280, %s283
      %p292 = scmp.eq.s32.totalorder %s29, 3
      %p293 = por %p291, %p292
      %p294 = scmp.ne.s32.totalorder %s283, %s284
      %p295 = scmp.eq.s32.totalorder %s29, 0
      %p296 = por %p294, %p295
      %p297 = scmp.ne.s32.totalorder %s283, %s284
      %p298 = scmp.eq.s32.totalorder %s30, 3
      %p299 = por %p297, %p298
      %p301 = scmp.ne.s32.totalorder %s284, %s300
      %p302 = scmp.eq.s32.totalorder %s30, 0
      %p303 = por %p301, %p302
      %s304 = ssub.s32 %s32, %s39
      %p305 = scmp.eq.s32.totalorder %s304, 0
      %s307 = sadd.s32 %s306, 1
      %s308 = scalar_select %p305, %s306, %s307
      %p311 = pneg %p305
      %p312 = scmp.eq.s32.totalorder %s24, 3
      %p313 = por %p311, %p312
      %p314 = scmp.ne.s32.totalorder %s306, %s309
      %p315 = scmp.eq.s32.totalorder %s24, 0
      %p316 = por %p314, %p315
      %p317 = scmp.ne.s32.totalorder %s306, %s309
      %p318 = scmp.eq.s32.totalorder %s29, 3
      %p319 = por %p317, %p318
      %p320 = scmp.ne.s32.totalorder %s309, %s310
      %p321 = scmp.eq.s32.totalorder %s29, 0
      %p322 = por %p320, %p321
      %p323 = scmp.ne.s32.totalorder %s309, %s310
      %p324 = scmp.eq.s32.totalorder %s30, 3
      %p325 = por %p323, %p324
      %p327 = scmp.ne.s32.totalorder %s310, %s326
      %p328 = scmp.eq.s32.totalorder %s30, 0
      %p329 = por %p327, %p328
      %s330 = ssub.s32 %s32, %s39
      %p331 = scmp.eq.s32.totalorder %s330, 0
      %s333 = sadd.s32 %s332, 1
      %s334 = scalar_select %p331, %s332, %s333
      %p337 = pneg %p331
      %p338 = scmp.eq.s32.totalorder %s24, 3
      %p339 = por %p337, %p338
      %p340 = scmp.ne.s32.totalorder %s332, %s335
      %p341 = scmp.eq.s32.totalorder %s24, 0
      %p342 = por %p340, %p341
      %p343 = scmp.ne.s32.totalorder %s332, %s335
      %p344 = scmp.eq.s32.totalorder %s29, 3
      %p345 = por %p343, %p344
      %p346 = scmp.ne.s32.totalorder %s335, %s336
      %p347 = scmp.eq.s32.totalorder %s29, 0
      %p348 = por %p346, %p347
      %p349 = scmp.ne.s32.totalorder %s335, %s336
      %p350 = scmp.eq.s32.totalorder %s30, 3
      %p351 = por %p349, %p350
      %p353 = scmp.ne.s32.totalorder %s336, %s352
      %p354 = scmp.eq.s32.totalorder %s30, 0
      %p355 = por %p353, %p354
      %s356 = ssub.s32 %s32, %s39
      %p357 = scmp.eq.s32.totalorder %s356, 0
      %s359 = sadd.s32 %s358, 1
      %s360 = scalar_select %p357, %s358, %s359
      %p363 = pneg %p357
      %p364 = scmp.eq.s32.totalorder %s24, 3
      %p365 = por %p363, %p364
      %p366 = scmp.ne.s32.totalorder %s358, %s361
      %p367 = scmp.eq.s32.totalorder %s24, 0
      %p368 = por %p366, %p367
      %p369 = scmp.ne.s32.totalorder %s358, %s361
      %p370 = scmp.eq.s32.totalorder %s29, 3
      %p371 = por %p369, %p370
      %p372 = scmp.ne.s32.totalorder %s361, %s362
      %p373 = scmp.eq.s32.totalorder %s29, 0
      %p374 = por %p372, %p373
      %p375 = scmp.ne.s32.totalorder %s361, %s362
      %p376 = scmp.eq.s32.totalorder %s30, 3
      %p377 = por %p375, %p376
      %p379 = scmp.ne.s32.totalorder %s362, %s378
      %p380 = scmp.eq.s32.totalorder %s30, 0
      %p381 = por %p379, %p380
      %s382 = ssub.s32 %s32, %s39
      %p383 = scmp.eq.s32.totalorder %s382, 0
      %s385 = sadd.s32 %s384, 1
      %s386 = scalar_select %p383, %s384, %s385
      %p389 = pneg %p383
      %p390 = scmp.eq.s32.totalorder %s24, 3
      %p391 = por %p389, %p390
      %p392 = scmp.ne.s32.totalorder %s384, %s387
      %p393 = scmp.eq.s32.totalorder %s24, 0
      %p394 = por %p392, %p393
      %p395 = scmp.ne.s32.totalorder %s384, %s387
      %p396 = scmp.eq.s32.totalorder %s29, 3
      %p397 = por %p395, %p396
      %p398 = scmp.ne.s32.totalorder %s387, %s388
      %p399 = scmp.eq.s32.totalorder %s29, 0
      %p400 = por %p398, %p399
      %p401 = scmp.ne.s32.totalorder %s387, %s388
      %p402 = scmp.eq.s32.totalorder %s30, 3
      %p403 = por %p401, %p402
      %p405 = scmp.ne.s32.totalorder %s388, %s404
      %p406 = scmp.eq.s32.totalorder %s30, 0
      %p407 = por %p405, %p406
      %s408 = ssub.s32 %s32, %s39
      %p409 = scmp.eq.s32.totalorder %s408, 0
      %s411 = sadd.s32 %s410, 1
      %s412 = scalar_select %p409, %s410, %s411
      %p415 = pneg %p409
      %p416 = scmp.eq.s32.totalorder %s24, 3
      %p417 = por %p415, %p416
      %p418 = scmp.ne.s32.totalorder %s410, %s413
      %p419 = scmp.eq.s32.totalorder %s24, 0
      %p420 = por %p418, %p419
      %p421 = scmp.ne.s32.totalorder %s410, %s413
      %p422 = scmp.eq.s32.totalorder %s29, 3
      %p423 = por %p421, %p422
      %p424 = scmp.ne.s32.totalorder %s413, %s414
      %p425 = scmp.eq.s32.totalorder %s29, 0
      %p426 = por %p424, %p425
      %p427 = scmp.ne.s32.totalorder %s413, %s414
      %p428 = scmp.eq.s32.totalorder %s30, 3
      %p429 = por %p427, %p428
      %p431 = scmp.ne.s32.totalorder %s414, %s430
      %p432 = scmp.eq.s32.totalorder %s30, 0
      %p433 = por %p431, %p432
      %s434 = ssub.s32 %s31, %s43
      %p435 = scmp.eq.s32.totalorder %s434, 0
      %s437 = sadd.s32 %s436, 1
      %s438 = scalar_select %p435, %s436, %s437
      %p441 = pneg %p435
      %p442 = scmp.eq.s32.totalorder %s24, 3
      %p443 = por %p441, %p442
      %p444 = scmp.ne.s32.totalorder %s436, %s439
      %p445 = scmp.eq.s32.totalorder %s24, 0
      %p446 = por %p444, %p445
      %p447 = scmp.ne.s32.totalorder %s436, %s439
      %p448 = scmp.eq.s32.totalorder %s29, 3
      %p449 = por %p447, %p448
      %p450 = scmp.ne.s32.totalorder %s439, %s440
      %p451 = scmp.eq.s32.totalorder %s29, 0
      %p452 = por %p450, %p451
      %p453 = scmp.ne.s32.totalorder %s439, %s440
      %p454 = scmp.eq.s32.totalorder %s30, 3
      %p455 = por %p453, %p454
      %p457 = scmp.ne.s32.totalorder %s440, %s456
      %p458 = scmp.eq.s32.totalorder %s30, 0
      %p459 = por %p457, %p458
      %p460 = scmp.le.s32.totalorder 1, %s24
      %p461 = scmp.lt.s32.totalorder %s24, 5
      %p462 = pnand %p460, %p461
      %p463 = pneg %p462
      // Predicated region
      $region9: #{tpu_custom_call.1} parent=5 // pred_check
        _
      $region10: #{tpu_custom_call.1} parent=5 // pred_check_branch
        %465 = sbr.rel (%p462) target = $region12
      $region11: #{tpu_custom_call.1} parent=5 // pred_region
        %s466 = ssub.s32 %s24, 1
      $region12: #{tpu_custom_call.1} parent=5 // pred_fallthru
        _
      %p467 = scmp.lt.s32.totalorder %s24, 4
      // Predicated region
      $region13: #{tpu_custom_call.1} parent=5 // pred_check
        %p468 = pneg %p467
      $region14: #{tpu_custom_call.1} parent=5 // pred_check_branch
        %470 = sbr.rel (%p468) target = $region16
      $region15: #{tpu_custom_call.1} parent=5 // pred_region
        // Predicated region
        $region17: #{tpu_custom_call.1} parent=15 // pred_check
          %p471 = pneg %p56
        $region18: #{tpu_custom_call.1} parent=15 // pred_check_branch
          %473 = sbr.rel (%p471) target = $region20
        $region19: #{tpu_custom_call.1} parent=15 // pred_region
          %p474 = scmp.lt.s32.totalorder %s31, 1
          %s475 = scalar_select %p474, %s31, 1
          %s476 = smul.addr %s475, 2
          %s477 = smul.addr %s476, 8
          %s478 = scalar_lea.vmem %s0, %s477
        $region20: #{tpu_custom_call.1} parent=15 // pred_fallthru
          _
        // Predicated region
        $region21: #{tpu_custom_call.1} parent=15 // pred_check
          %p479 = pneg %p82
        $region22: #{tpu_custom_call.1} parent=15 // pred_check_branch
          %481 = sbr.rel (%p479) target = $region24
        $region23: #{tpu_custom_call.1} parent=15 // pred_region
          %p482 = scmp.lt.s32.totalorder %s31, 1
          %s483 = scalar_select %p482, %s31, 1
          %s484 = scalar_lea.vmem %s1, %s483
        $region24: #{tpu_custom_call.1} parent=15 // pred_fallthru
          _
        // Predicated region
        $region25: #{tpu_custom_call.1} parent=15 // pred_check
          %p485 = pneg %p108
        $region26: #{tpu_custom_call.1} parent=15 // pred_check_branch
          %487 = sbr.rel (%p485) target = $region28
        $region27: #{tpu_custom_call.1} parent=15 // pred_region
          %p488 = scmp.lt.s32.totalorder %s31, 1
          %s489 = scalar_select %p488, %s31, 1
          %s490 = smul.addr %s489, 2
          %s491 = smul.addr %s490, 8
          %s492 = scalar_lea.vmem %s2, %s491
        $region28: #{tpu_custom_call.1} parent=15 // pred_fallthru
          _
        // Predicated region
        $region29: #{tpu_custom_call.1} parent=15 // pred_check
          %p493 = pneg %p134
        $region30: #{tpu_custom_call.1} parent=15 // pred_check_branch
          %495 = sbr.rel (%p493) target = $region32
        $region31: #{tpu_custom_call.1} parent=15 // pred_region
          %p496 = scmp.lt.s32.totalorder %s32, 1
          %s497 = scalar_select %p496, %s32, 1
          %s498 = smul.addr %s497, 4
          %s499 = smul.addr %s498, 4
          %s500 = scalar_lea.vmem %s3, %s499
        $region32: #{tpu_custom_call.1} parent=15 // pred_fallthru
          _
        // Predicated region
        $region33: #{tpu_custom_call.1} parent=15 // pred_check
          %p501 = pneg %p160
        $region34: #{tpu_custom_call.1} parent=15 // pred_check_branch
          %503 = sbr.rel (%p501) target = $region36
        $region35: #{tpu_custom_call.1} parent=15 // pred_region
          %p504 = scmp.lt.s32.totalorder %s32, 1
          %s505 = scalar_select %p504, %s32, 1
          %s506 = scalar_lea.vmem %s4, %s505
        $region36: #{tpu_custom_call.1} parent=15 // pred_fallthru
          _
        // Predicated region
        $region37: #{tpu_custom_call.1} parent=15 // pred_check
          %p507 = pneg %p186
        $region38: #{tpu_custom_call.1} parent=15 // pred_check_branch
          %509 = sbr.rel (%p507) target = $region40
        $region39: #{tpu_custom_call.1} parent=15 // pred_region
          %p510 = scmp.lt.s32.totalorder %s32, 1
          %s511 = scalar_select %p510, %s32, 1
          %s512 = smul.addr %s511, 4
          %s513 = smul.addr %s512, 4
          %s514 = scalar_lea.vmem %s5, %s513
        $region40: #{tpu_custom_call.1} parent=15 // pred_fallthru
          _
        // Predicated region
        $region41: #{tpu_custom_call.1} parent=15 // pred_check
          %p515 = pneg %p212
        $region42: #{tpu_custom_call.1} parent=15 // pred_check_branch
          %517 = sbr.rel (%p515) target = $region44
        $region43: #{tpu_custom_call.1} parent=15 // pred_region
          %p518 = scmp.lt.s32.totalorder %s32, 1
          %s519 = scalar_select %p518, %s32, 1
          %s520 = scalar_lea.vmem %s6, %s519
        $region44: #{tpu_custom_call.1} parent=15 // pred_fallthru
          _
        // Predicated region
        $region45: #{tpu_custom_call.1} parent=15 // pred_check
          %p521 = pneg %p238
        $region46: #{tpu_custom_call.1} parent=15 // pred_check_branch
          %523 = sbr.rel (%p521) target = $region48
        $region47: #{tpu_custom_call.1} parent=15 // pred_region
          %p524 = scmp.lt.s32.totalorder %s32, 1
          %s525 = scalar_select %p524, %s32, 1
          %s526 = scalar_lea.vmem %s7, %s525
        $region48: #{tpu_custom_call.1} parent=15 // pred_fallthru
          _
        // Predicated region
        $region49: #{tpu_custom_call.1} parent=15 // pred_check
          %p527 = pneg %p264
        $region50: #{tpu_custom_call.1} parent=15 // pred_check_branch
          %529 = sbr.rel (%p527) target = $region52
        $region51: #{tpu_custom_call.1} parent=15 // pred_region
          %p530 = scmp.lt.s32.totalorder %s32, 1
          %s531 = scalar_select %p530, %s32, 1
          %s532 = scalar_lea.vmem %s8, %s531
        $region52: #{tpu_custom_call.1} parent=15 // pred_fallthru
          _
        // Predicated region
        $region53: #{tpu_custom_call.1} parent=15 // pred_check
          %p533 = pneg %p290
        $region54: #{tpu_custom_call.1} parent=15 // pred_check_branch
          %535 = sbr.rel (%p533) target = $region56
        $region55: #{tpu_custom_call.1} parent=15 // pred_region
          %p536 = scmp.lt.s32.totalorder %s32, 1
          %s537 = scalar_select %p536, %s32, 1
          %s538 = smul.addr %s537, 12
          %s539 = smul.addr %s538, 4
          %s540 = scalar_lea.vmem %s9, %s539
        $region56: #{tpu_custom_call.1} parent=15 // pred_fallthru
          _
        // Predicated region
        $region57: #{tpu_custom_call.1} parent=15 // pred_check
          %p541 = pneg %p316
        $region58: #{tpu_custom_call.1} parent=15 // pred_check_branch
          %543 = sbr.rel (%p541) target = $region60
        $region59: #{tpu_custom_call.1} parent=15 // pred_region
          %p544 = scmp.lt.s32.totalorder %s32, 1
          %s545 = scalar_select %p544, %s32, 1
          %s546 = scalar_lea.vmem %s10, %s545
        $region60: #{tpu_custom_call.1} parent=15 // pred_fallthru
          _
        // Predicated region
        $region61: #{tpu_custom_call.1} parent=15 // pred_check
          %p547 = pneg %p342
        $region62: #{tpu_custom_call.1} parent=15 // pred_check_branch
          %549 = sbr.rel (%p547) target = $region64
        $region63: #{tpu_custom_call.1} parent=15 // pred_region
          %p550 = scmp.lt.s32.totalorder %s32, 1
          %s551 = scalar_select %p550, %s32, 1
          %s552 = smul.addr %s551, 48
          %s553 = smul.addr %s552, 4
          %s554 = scalar_lea.vmem %s11, %s553
        $region64: #{tpu_custom_call.1} parent=15 // pred_fallthru
          _
        // Predicated region
        $region65: #{tpu_custom_call.1} parent=15 // pred_check
          %p555 = pneg %p368
        $region66: #{tpu_custom_call.1} parent=15 // pred_check_branch
          %557 = sbr.rel (%p555) target = $region68
        $region67: #{tpu_custom_call.1} parent=15 // pred_region
          %p558 = scmp.lt.s32.totalorder %s32, 1
          %s559 = scalar_select %p558, %s32, 1
          %s560 = scalar_lea.vmem %s12, %s559
        $region68: #{tpu_custom_call.1} parent=15 // pred_fallthru
          _
        // Predicated region
        $region69: #{tpu_custom_call.1} parent=15 // pred_check
          %p561 = pneg %p394
        $region70: #{tpu_custom_call.1} parent=15 // pred_check_branch
          %563 = sbr.rel (%p561) target = $region72
        $region71: #{tpu_custom_call.1} parent=15 // pred_region
          %p564 = scmp.lt.s32.totalorder %s32, 1
          %s565 = scalar_select %p564, %s32, 1
          %s566 = scalar_lea.vmem %s13, %s565
        $region72: #{tpu_custom_call.1} parent=15 // pred_fallthru
          _
        // Predicated region
        $region73: #{tpu_custom_call.1} parent=15 // pred_check
          %p567 = pneg %p420
        $region74: #{tpu_custom_call.1} parent=15 // pred_check_branch
          %569 = sbr.rel (%p567) target = $region76
        $region75: #{tpu_custom_call.1} parent=15 // pred_region
          %p570 = scmp.lt.s32.totalorder %s32, 1
          %s571 = scalar_select %p570, %s32, 1
          %s572 = scalar_lea.vmem %s14, %s571
        $region76: #{tpu_custom_call.1} parent=15 // pred_fallthru
          _
      $region16: #{tpu_custom_call.1} parent=5 // pred_fallthru
        _
      %p573 = scmp.le.s32.totalorder 1, %s24
      %p574 = scmp.lt.s32.totalorder %s24, 5
      %p575 = pnand %p573, %p574
      %p576 = pneg %p575
      // Predicated region
      $region77: #{tpu_custom_call.1} parent=5 // pred_check
        _
      $region78: #{tpu_custom_call.1} parent=5 // pred_check_branch
        %578 = sbr.rel (%p575) target = $region80
      $region79: #{tpu_custom_call.1} parent=5 // pred_region
        %s579 = ssub.s32 %s24, 1
        %p580 = scmp.lt.s32.totalorder %s33, 1
        %s581 = scalar_select %p580, %s33, 1
        %s582 = smul.addr %s581, 2
        %s583 = smul.addr %s582, 8
        %s584 = scalar_lea.vmem %s0, %s583
        %p585 = pneg %p62
        %p586 = pneg %p59
        %p587 = scmp.lt.s32.totalorder %s33, 1
        %s588 = scalar_select %p587, %s33, 1
        %s589 = scalar_lea.vmem %s1, %s588
        %p590 = pneg %p88
        %p591 = pneg %p85
        %p592 = scmp.lt.s32.totalorder %s33, 1
        %s593 = scalar_select %p592, %s33, 1
        %s594 = smul.addr %s593, 2
        %s595 = smul.addr %s594, 8
        %s596 = scalar_lea.vmem %s2, %s595
        %p597 = pneg %p114
        %p598 = pneg %p111
        %p599 = scmp.lt.s32.totalorder %s34, 1
        %s600 = scalar_select %p599, %s34, 1
        %s601 = smul.addr %s600, 4
        %s602 = smul.addr %s601, 4
        %s603 = scalar_lea.vmem %s3, %s602
        %p604 = pneg %p140
        %p605 = pneg %p137
        %p606 = scmp.lt.s32.totalorder %s34, 1
        %s607 = scalar_select %p606, %s34, 1
        %s608 = scalar_lea.vmem %s4, %s607
        %p609 = pneg %p166
        %p610 = pneg %p163
        %p611 = scmp.lt.s32.totalorder %s34, 1
        %s612 = scalar_select %p611, %s34, 1
        %s613 = smul.addr %s612, 4
        %s614 = smul.addr %s613, 4
        %s615 = scalar_lea.vmem %s5, %s614
        %p616 = pneg %p192
        %p617 = pneg %p189
        %p618 = scmp.lt.s32.totalorder %s34, 1
        %s619 = scalar_select %p618, %s34, 1
        %s620 = scalar_lea.vmem %s6, %s619
        %p621 = pneg %p218
        %p622 = pneg %p215
        %p623 = scmp.lt.s32.totalorder %s34, 1
        %s624 = scalar_select %p623, %s34, 1
        %s625 = scalar_lea.vmem %s7, %s624
        %p626 = pneg %p244
        %p627 = pneg %p241
        %p628 = scmp.lt.s32.totalorder %s34, 1
        %s629 = scalar_select %p628, %s34, 1
        %s630 = scalar_lea.vmem %s8, %s629
        %p631 = pneg %p270
        %p632 = pneg %p267
        %p633 = scmp.lt.s32.totalorder %s34, 1
        %s634 = scalar_select %p633, %s34, 1
        %s635 = smul.addr %s634, 12
        %s636 = smul.addr %s635, 4
        %s637 = scalar_lea.vmem %s9, %s636
        %p638 = pneg %p296
        %p639 = pneg %p293
        %p640 = scmp.lt.s32.totalorder %s34, 1
        %s641 = scalar_select %p640, %s34, 1
        %s642 = scalar_lea.vmem %s10, %s641
        %p643 = pneg %p322
        %p644 = pneg %p319
        %p645 = scmp.lt.s32.totalorder %s34, 1
        %s646 = scalar_select %p645, %s34, 1
        %s647 = smul.addr %s646, 48
        %s648 = smul.addr %s647, 4
        %s649 = scalar_lea.vmem %s11, %s648
        %p650 = pneg %p348
        %p651 = pneg %p345
        %p652 = scmp.lt.s32.totalorder %s34, 1
        %s653 = scalar_select %p652, %s34, 1
        %s654 = scalar_lea.vmem %s12, %s653
        %p655 = pneg %p374
        %p656 = pneg %p371
        %p657 = scmp.lt.s32.totalorder %s34, 1
        %s658 = scalar_select %p657, %s34, 1
        %s659 = scalar_lea.vmem %s13, %s658
        %p660 = pneg %p400
        %p661 = pneg %p397
        %p662 = scmp.lt.s32.totalorder %s34, 1
        %s663 = scalar_select %p662, %s34, 1
        %s664 = scalar_lea.vmem %s14, %s663
        %p665 = pneg %p426
        %p666 = pneg %p423
        %p667 = pneg %p452
        %p668 = pneg %p449
        %s669 = sand.u32 %s439, 1
        %s670 = scalar_lea.sflag [#allocation3], %s669
        %s671 = sand.u32 %s439, 1
        %s672 = smul.addr %s671, 16
        %s673 = scalar_lea.vmem [#allocation2], %s672
        %p674 = scmp.lt.s32.totalorder %s33, 1
        %s675 = scalar_select %p674, %s33, 1
        %s676 = smul.addr %s675, 2
        %s677 = smul.addr %s676, 8
        %s678 = scalar_lea.vmem %s0, %s677
        %p679 = scmp.lt.s32.totalorder %s33, 1
        %s680 = scalar_select %p679, %s33, 1
        %s681 = scalar_lea.vmem %s1, %s680
        %p682 = scmp.lt.s32.totalorder %s33, 1
        %s683 = scalar_select %p682, %s33, 1
        %s684 = smul.addr %s683, 2
        %s685 = smul.addr %s684, 8
        %s686 = scalar_lea.vmem %s2, %s685
        %p687 = scmp.lt.s32.totalorder %s34, 1
        %s688 = scalar_select %p687, %s34, 1
        %s689 = smul.addr %s688, 4
        %s690 = smul.addr %s689, 4
        %s691 = scalar_lea.vmem %s3, %s690
        %p692 = scmp.lt.s32.totalorder %s34, 1
        %s693 = scalar_select %p692, %s34, 1
        %s694 = scalar_lea.vmem %s4, %s693
        %p695 = scmp.lt.s32.totalorder %s34, 1
        %s696 = scalar_select %p695, %s34, 1
        %s697 = smul.addr %s696, 4
        %s698 = smul.addr %s697, 4
        %s699 = scalar_lea.vmem %s5, %s698
        %p700 = scmp.lt.s32.totalorder %s34, 1
        %s701 = scalar_select %p700, %s34, 1
        %s702 = scalar_lea.vmem %s6, %s701
        %p703 = scmp.lt.s32.totalorder %s34, 1
        %s704 = scalar_select %p703, %s34, 1
        %s705 = scalar_lea.vmem %s7, %s704
        %p706 = scmp.lt.s32.totalorder %s34, 1
        %s707 = scalar_select %p706, %s34, 1
        %s708 = scalar_lea.vmem %s8, %s707
        %p709 = scmp.lt.s32.totalorder %s34, 1
        %s710 = scalar_select %p709, %s34, 1
        %s711 = smul.addr %s710, 12
        %s712 = smul.addr %s711, 4
        %s713 = scalar_lea.vmem %s9, %s712
        %p714 = scmp.lt.s32.totalorder %s34, 1
        %s715 = scalar_select %p714, %s34, 1
        %s716 = scalar_lea.vmem %s10, %s715
        %p717 = scmp.lt.s32.totalorder %s34, 1
        %s718 = scalar_select %p717, %s34, 1
        %s719 = smul.addr %s718, 48
        %s720 = smul.addr %s719, 4
        %s721 = scalar_lea.vmem %s11, %s720
        %p722 = scmp.lt.s32.totalorder %s34, 1
        %s723 = scalar_select %p722, %s34, 1
        %s724 = scalar_lea.vmem %s12, %s723
        %p725 = scmp.lt.s32.totalorder %s34, 1
        %s726 = scalar_select %p725, %s34, 1
        %s727 = scalar_lea.vmem %s13, %s726
        %p728 = scmp.lt.s32.totalorder %s34, 1
        %s729 = scalar_select %p728, %s34, 1
        %s730 = scalar_lea.vmem %s14, %s729
        %p732 = scmp.eq.s32.totalorder %s34, 0
        // Predicated region
        $region81: #{tpu_custom_call.1} parent=79 // pred_check
          %p733 = pneg %p732
        $region82: #{tpu_custom_call.1} parent=79 // pred_check_branch
          %735 = sbr.rel (%p733) target = $region84
        $region83: #{tpu_custom_call.1} parent=79 // pred_region
          %v736 = vld [vmem:[%s678] sm:$0xff]
          %v737 = vld [vmem:[%s678 + $0x8] sm:$0xff]
          %vm738 = vcmask 261120
          %739 = vst.msk [vmem:[%s673] sm:$0xff] %vm738, %v736
          %740 = vst.msk [vmem:[%s673 + $0x8] sm:$0xff] %vm738, %v737
        $region84: #{tpu_custom_call.1} parent=79 // pred_fallthru
          _
        %v741 = vld [vmem:[%s673] sm:$0xff]
        %v742 = vld [vmem:[%s673 + $0x8] sm:$0xff]
        %v743 = vld [vmem:[%s681] sm:$0x1]
        %v744 = vld [vmem:[%s686] sm:$0xff]
        %v745 = vld [vmem:[%s686 + $0x8] sm:$0xff]
        %v746 = vpack.c.bf16 %v742, %v741
        %v747 = vld [vmem:[%s691] sm:$0xf]
        %v748 = vld [vmem:[%s691 + $0x4] sm:$0xf]
        %v749 = vld [vmem:[%s691 + $0x8] sm:$0xf]
        %v750 = vld [vmem:[%s691 + $0xc] sm:$0xf]
        %v751 = vld [vmem:[%s694] sm:$0x1]
        %v753 = vlaneseq
        %v754 = vshrl.u32 %v753, 7
        %v755 = vsub.s32 0, %v754
        %v756 = vrot.slane %v751, %v755
        %v762 = vunpack.c.l.b16 %v747
        %v763 = vunpack.c.l.b16 %v748
        %v764 = vunpack.c.l.b16 %v749
        %v765 = vunpack.c.l.b16 %v750
        %v766 = vpack.c.b16 %v763, %v762
        %v767 = vpack.c.b16 %v765, %v764
        %vm770 = vcmask 261120
        %v772 = vsel %vm770, %v746, 0
        %774 = vmatprep.subr.bf16.mxu0 0
        %775 = vmatpush1.bf16.msra.mxu0 %v766
        %776 = vmatprep.subr.bf16.mxu0 0
        %777 = vmatpush1.bf16.msra.mxu0 %v767
        %778 = vmatprep.subr.bf16.mxu0 0
        %779 = vmatpush1.bf16.msra.mxu0 0
        %780 = vmatprep.subr.bf16.mxu0 0
        %781 = vmatpush1.bf16.msra.mxu0 0
        %782 = vmatprep.subr.bf16.mxu0 0
        %783 = vmatpush1.bf16.msra.mxu0 0
        %784 = vmatprep.subr.bf16.mxu0 0
        %785 = vmatpush1.bf16.msra.mxu0 0
        %786 = vmatprep.subr.bf16.mxu0 0
        %787 = vmatpush1.bf16.msra.mxu0 0
        %788 = vmatprep.subr.bf16.mxu0 0
        %789 = vmatpush1.bf16.msra.mxu0 0
        %790 = vmatprep.subr.bf16.mxu0 0
        %791 = vmatpush1.bf16.msra.mxu0 0
        %792 = vmatprep.subr.bf16.mxu0 0
        %793 = vmatpush1.bf16.msra.mxu0 0
        %794 = vmatprep.subr.bf16.mxu0 0
        %795 = vmatpush1.bf16.msra.mxu0 0
        %796 = vmatprep.subr.bf16.mxu0 0
        %797 = vmatpush1.bf16.msra.mxu0 0
        %798 = vmatprep.subr.bf16.mxu0 0
        %799 = vmatpush1.bf16.msra.mxu0 0
        %800 = vmatprep.subr.bf16.mxu0 0
        %801 = vmatpush1.bf16.msra.mxu0 0
        %802 = vmatprep.subr.bf16.mxu0 0
        %803 = vmatpush1.bf16.msra.mxu0 0
        %804 = vmatprep.subr.bf16.mxu0 0
        %805 = vmatpush1.bf16.msra.mxu0 0
        %806 = vmatprep.mubr.bf16.mxu0 0
        %807 = vmatmul.mubr.bf16.gmra.mrb[0].mxu0 %v772
        %v808 = vpop.f32.mrb[0].mxu0
        %v809 = vadd.f32 %v756, %v808
        %v810 = vpop.f32.mrb[0].mxu0
        %v811 = vpop.f32.mrb[0].mxu0
        %v812 = vadd.f32 %v756, %v811
        %v813 = vpop.f32.mrb[0].mxu0
        %814 = vdwg.mxu0
        %v815 = vpack.c.bf16 %v812, %v809
        %817 = vrot.lane.b32.xlu0 %v815, 96
        %v818 = vpop.permute.xlu0 %817
        %vm819 = vcmask 130048
        %v821 = vsel %vm819, %v815, 0
        %v824 = vsel %vm819, %v818, 0
        %826 = vmatprep.subr.bf16.mxu0 0
        %827 = vmatpush1.bf16.xpose.msra.mxu0 %v824
        %828 = vmatprep.subr.bf16.mxu0 0
        %829 = vmatpush1.bf16.xpose.msra.mxu0 0
        %830 = vmatprep.subr.bf16.mxu0 0
        %831 = vmatpush1.bf16.xpose.msra.mxu0 0
        %832 = vmatprep.subr.bf16.mxu0 0
        %833 = vmatpush1.bf16.xpose.msra.mxu0 0
        %834 = vmatprep.subr.bf16.mxu0 0
        %835 = vmatpush1.bf16.xpose.msra.mxu0 0
        %836 = vmatprep.subr.bf16.mxu0 0
        %837 = vmatpush1.bf16.xpose.msra.mxu0 0
        %838 = vmatprep.subr.bf16.mxu0 0
        %839 = vmatpush1.bf16.xpose.msra.mxu0 0
        %840 = vmatprep.subr.bf16.mxu0 0
        %841 = vmatpush1.bf16.xpose.msra.mxu0 0
        %842 = vmatprep.subr.bf16.mxu0 0
        %843 = vmatpush1.bf16.xpose.msra.mxu0 0
        %844 = vmatprep.subr.bf16.mxu0 0
        %845 = vmatpush1.bf16.xpose.msra.mxu0 0
        %846 = vmatprep.subr.bf16.mxu0 0
        %847 = vmatpush1.bf16.xpose.msra.mxu0 0
        %848 = vmatprep.subr.bf16.mxu0 0
        %849 = vmatpush1.bf16.xpose.msra.mxu0 0
        %850 = vmatprep.subr.bf16.mxu0 0
        %851 = vmatpush1.bf16.xpose.msra.mxu0 0
        %852 = vmatprep.subr.bf16.mxu0 0
        %853 = vmatpush1.bf16.xpose.msra.mxu0 0
        %854 = vmatprep.subr.bf16.mxu0 0
        %855 = vmatpush1.bf16.xpose.msra.mxu0 0
        %856 = vmatprep.subr.bf16.mxu0 0
        %857 = vmatpush1.bf16.xpose.msra.mxu0 0
        %858 = vmatprep.mubr.bf16.mxu0 0
        %859 = vmatmul.mubr.bf16.gmra.mrb[0].mxu0 %v821
        %v860 = vpop.f32.mrb[0].mxu0
        %v861 = vadd.f32 0.0, %v860
        %v862 = vpop.f32.mrb[0].mxu0
        %v863 = vpop.f32.mrb[0].mxu0
        %v864 = vadd.f32 0.0, %v863
        %v865 = vpop.f32.mrb[0].mxu0
        %866 = vdwg.mxu0
        %v867 = vmul.f32 %v861, 0.25
        %v868 = vmul.f32 %v864, 0.25
        %v870 = vlaneseq
        %v871 = vshrl.u32 %v870, 7
        %v872 = vsub.s32 0, %v871
        %v873 = vrot.slane %v743, %v872
        %v875 = vadd.f32 %v867, %v873
        %v876 = vadd.f32 %v868, %v873
        %v877 = vsel %vm819, %v875, -inf
        %878 = vmax.xlane.f32.xlu0 %v877
        %v879 = vpop.xlane.xlu0 %878
        %v880 = vsel %vm819, %v876, -inf
        %881 = vmax.xlane.f32.xlu0 %v880
        %v882 = vpop.xlane.xlu0 %881
        %v883 = vsub.f32 %v875, %v879
        %v884 = vsub.f32 %v876, %v882
        %v885 = vmul.f32 %v883, 1.442695
        %v886 = vpow.pop %v885
        %v887 = vmul.f32 %v884, 1.442695
        %v888 = vpow.pop %v887
        %v889 = vsel %vm819, %v886, 0.0
        %890 = vadd.xlane.f32.xlu0 %v889
        %v891 = vpop.xlane.xlu0 %890
        %v892 = vsel %vm819, %v888, 0.0
        %893 = vadd.xlane.f32.xlu0 %v892
        %v894 = vpop.xlane.xlu0 %893
        %v895 = vrcp.pop %v891
        %v896 = vrcp.pop %v894
        %v897 = vmul.f32 %v886, %v895
        %v898 = vmul.f32 %v888, %v896
        %v899 = vpack.c.bf16 %v898, %v897
        %900 = vrot.lane.b32.xlu0 %v815, 64
        %v901 = vpop.permute.xlu0 %900
        %v904 = vsel %vm819, %v899, 0
        %906 = vmatprep.subr.bf16.mxu0 0
        %907 = vmatpush1.bf16.msra.mxu0 %v901
        %908 = vmatprep.subr.bf16.mxu0 0
        %909 = vmatpush1.bf16.msra.mxu0 0
        %910 = vmatprep.subr.bf16.mxu0 0
        %911 = vmatpush1.bf16.msra.mxu0 0
        %912 = vmatprep.subr.bf16.mxu0 0
        %913 = vmatpush1.bf16.msra.mxu0 0
        %914 = vmatprep.subr.bf16.mxu0 0
        %915 = vmatpush1.bf16.msra.mxu0 0
        %916 = vmatprep.subr.bf16.mxu0 0
        %917 = vmatpush1.bf16.msra.mxu0 0
        %918 = vmatprep.subr.bf16.mxu0 0
        %919 = vmatpush1.bf16.msra.mxu0 0
        %920 = vmatprep.subr.bf16.mxu0 0
        %921 = vmatpush1.bf16.msra.mxu0 0
        %922 = vmatprep.subr.bf16.mxu0 0
        %923 = vmatpush1.bf16.msra.mxu0 0
        %924 = vmatprep.subr.bf16.mxu0 0
        %925 = vmatpush1.bf16.msra.mxu0 0
        %926 = vmatprep.subr.bf16.mxu0 0
        %927 = vmatpush1.bf16.msra.mxu0 0
        %928 = vmatprep.subr.bf16.mxu0 0
        %929 = vmatpush1.bf16.msra.mxu0 0
        %930 = vmatprep.subr.bf16.mxu0 0
        %931 = vmatpush1.bf16.msra.mxu0 0
        %932 = vmatprep.subr.bf16.mxu0 0
        %933 = vmatpush1.bf16.msra.mxu0 0
        %934 = vmatprep.subr.bf16.mxu0 0
        %935 = vmatpush1.bf16.msra.mxu0 0
        %936 = vmatprep.subr.bf16.mxu0 0
        %937 = vmatpush1.bf16.msra.mxu0 0
        %938 = vmatprep.mubr.bf16.mxu0 0
        %939 = vmatmul.mubr.bf16.gmra.mrb[0].mxu0 %v904
        %v940 = vpop.f32.mrb[0].mxu0
        %v941 = vadd.f32 0.0, %v940
        %v942 = vpop.f32.mrb[0].mxu0
        %v943 = vpop.f32.mrb[0].mxu0
        %v944 = vadd.f32 0.0, %v943
        %v945 = vpop.f32.mrb[0].mxu0
        %946 = vdwg.mxu0
        %947 = vrot.lane.b32.xlu0 %v815, 112
        %v948 = vpop.permute.xlu0 %947
        %949 = vrot.lane.b32.xlu0 %v815, 80
        %v950 = vpop.permute.xlu0 %949
        %v952 = vsel %vm819, %v948, 0
        %v955 = vsel %vm819, %v950, 0
        %957 = vmatprep.subr.bf16.mxu0 0
        %958 = vmatpush1.bf16.xpose.msra.mxu0 %v955
        %959 = vmatprep.subr.bf16.mxu0 0
        %960 = vmatpush1.bf16.xpose.msra.mxu0 0
        %961 = vmatprep.subr.bf16.mxu0 0
        %962 = vmatpush1.bf16.xpose.msra.mxu0 0
        %963 = vmatprep.subr.bf16.mxu0 0
        %964 = vmatpush1.bf16.xpose.msra.mxu0 0
        %965 = vmatprep.subr.bf16.mxu0 0
        %966 = vmatpush1.bf16.xpose.msra.mxu0 0
        %967 = vmatprep.subr.bf16.mxu0 0
        %968 = vmatpush1.bf16.xpose.msra.mxu0 0
        %969 = vmatprep.subr.bf16.mxu0 0
        %970 = vmatpush1.bf16.xpose.msra.mxu0 0
        %971 = vmatprep.subr.bf16.mxu0 0
        %972 = vmatpush1.bf16.xpose.msra.mxu0 0
        %973 = vmatprep.subr.bf16.mxu0 0
        %974 = vmatpush1.bf16.xpose.msra.mxu0 0
        %975 = vmatprep.subr.bf16.mxu0 0
        %976 = vmatpush1.bf16.xpose.msra.mxu0 0
        %977 = vmatprep.subr.bf16.mxu0 0
        %978 = vmatpush1.bf16.xpose.msra.mxu0 0
        %979 = vmatprep.subr.bf16.mxu0 0
        %980 = vmatpush1.bf16.xpose.msra.mxu0 0
        %981 = vmatprep.subr.bf16.mxu0 0
        %982 = vmatpush1.bf16.xpose.msra.mxu0 0
        %983 = vmatprep.subr.bf16.mxu0 0
        %984 = vmatpush1.bf16.xpose.msra.mxu0 0
        %985 = vmatprep.subr.bf16.mxu0 0
        %986 = vmatpush1.bf16.xpose.msra.mxu0 0
        %987 = vmatprep.subr.bf16.mxu0 0
        %988 = vmatpush1.bf16.xpose.msra.mxu0 0
        %989 = vmatprep.mubr.bf16.mxu0 0
        %990 = vmatmul.mubr.bf16.gmra.mrb[0].mxu0 %v952
        %v991 = vpop.f32.mrb[0].mxu0
        %v992 = vadd.f32 0.0, %v991
        %v993 = vpop.f32.mrb[0].mxu0
        %v994 = vpop.f32.mrb[0].mxu0
        %v995 = vadd.f32 0.0, %v994
        %v996 = vpop.f32.mrb[0].mxu0
        %997 = vdwg.mxu0
        %v998 = vmul.f32 %v992, 0.25
        %v999 = vmul.f32 %v995, 0.25
        %v1000 = vadd.f32 %v998, %v873
        %v1001 = vadd.f32 %v999, %v873
        %v1002 = vsel %vm819, %v1000, -inf
        %1003 = vmax.xlane.f32.xlu0 %v1002
        %v1004 = vpop.xlane.xlu0 %1003
        %v1005 = vsel %vm819, %v1001, -inf
        %1006 = vmax.xlane.f32.xlu0 %v1005
        %v1007 = vpop.xlane.xlu0 %1006
        %v1008 = vsub.f32 %v1000, %v1004
        %v1009 = vsub.f32 %v1001, %v1007
        %v1010 = vmul.f32 %v1008, 1.442695
        %v1011 = vpow.pop %v1010
        %v1012 = vmul.f32 %v1009, 1.442695
        %v1013 = vpow.pop %v1012
        %v1014 = vsel %vm819, %v1011, 0.0
        %1015 = vadd.xlane.f32.xlu0 %v1014
        %v1016 = vpop.xlane.xlu0 %1015
        %v1017 = vsel %vm819, %v1013, 0.0
        %1018 = vadd.xlane.f32.xlu0 %v1017
        %v1019 = vpop.xlane.xlu0 %1018
        %v1020 = vrcp.pop %v1016
        %v1021 = vrcp.pop %v1019
        %v1022 = vmul.f32 %v1011, %v1020
        %v1023 = vmul.f32 %v1013, %v1021
        %v1024 = vpack.c.bf16 %v1023, %v1022
        %1025 = vrot.lane.b32.xlu0 %v815, 48
        %v1026 = vpop.permute.xlu0 %1025
        %v1029 = vsel %vm819, %v1024, 0
        %1031 = vmatprep.subr.bf16.mxu0 0
        %1032 = vmatpush1.bf16.msra.mxu0 %v1026
        %1033 = vmatprep.subr.bf16.mxu0 0
        %1034 = vmatpush1.bf16.msra.mxu0 0
        %1035 = vmatprep.subr.bf16.mxu0 0
        %1036 = vmatpush1.bf16.msra.mxu0 0
        %1037 = vmatprep.subr.bf16.mxu0 0
        %1038 = vmatpush1.bf16.msra.mxu0 0
        %1039 = vmatprep.subr.bf16.mxu0 0
        %1040 = vmatpush1.bf16.msra.mxu0 0
        %1041 = vmatprep.subr.bf16.mxu0 0
        %1042 = vmatpush1.bf16.msra.mxu0 0
        %1043 = vmatprep.subr.bf16.mxu0 0
        %1044 = vmatpush1.bf16.msra.mxu0 0
        %1045 = vmatprep.subr.bf16.mxu0 0
        %1046 = vmatpush1.bf16.msra.mxu0 0
        %1047 = vmatprep.subr.bf16.mxu0 0
        %1048 = vmatpush1.bf16.msra.mxu0 0
        %1049 = vmatprep.subr.bf16.mxu0 0
        %1050 = vmatpush1.bf16.msra.mxu0 0
        %1051 = vmatprep.subr.bf16.mxu0 0
        %1052 = vmatpush1.bf16.msra.mxu0 0
        %1053 = vmatprep.subr.bf16.mxu0 0
        %1054 = vmatpush1.bf16.msra.mxu0 0
        %1055 = vmatprep.subr.bf16.mxu0 0
        %1056 = vmatpush1.bf16.msra.mxu0 0
        %1057 = vmatprep.subr.bf16.mxu0 0
        %1058 = vmatpush1.bf16.msra.mxu0 0
        %1059 = vmatprep.subr.bf16.mxu0 0
        %1060 = vmatpush1.bf16.msra.mxu0 0
        %1061 = vmatprep.subr.bf16.mxu0 0
        %1062 = vmatpush1.bf16.msra.mxu0 0
        %1063 = vmatprep.mubr.bf16.mxu0 0
        %1064 = vmatmul.mubr.bf16.gmra.mrb[0].mxu0 %v1029
        %v1065 = vpop.f32.mrb[0].mxu0
        %v1066 = vadd.f32 0.0, %v1065
        %v1067 = vpop.f32.mrb[0].mxu0
        %v1068 = vpop.f32.mrb[0].mxu0
        %v1069 = vadd.f32 0.0, %v1068
        %v1070 = vpop.f32.mrb[0].mxu0
        %1071 = vdwg.mxu0
        %1074 = vrot.lane.b32.xlu0 %v1066, 16
        %v1075 = vpop.permute.xlu0 %1074
        %1076 = vrot.lane.b32.xlu0 %v1069, 16
        %v1077 = vpop.permute.xlu0 %1076
        %v1080 = vsel %vm819, %v941, %v1075
        %v1081 = vsel %vm819, %v944, %v1077
        %v1082 = vpack.c.bf16 %v1081, %v1080
        %v1083 = vld [vmem:[%s699] sm:$0xf]
        %v1084 = vld [vmem:[%s699 + $0x4] sm:$0xf]
        %v1085 = vld [vmem:[%s699 + $0x8] sm:$0xf]
        %v1086 = vld [vmem:[%s699 + $0xc] sm:$0xf]
        %v1091 = vunpack.c.l.b16 %v1083
        %v1092 = vunpack.c.l.b16 %v1084
        %v1093 = vunpack.c.l.b16 %v1085
        %v1094 = vunpack.c.l.b16 %v1086
        %v1095 = vpack.c.b16 %v1092, %v1091
        %v1096 = vpack.c.b16 %v1094, %v1093
        %v1100 = vsel %vm770, %v1082, 0
        %1102 = vmatprep.subr.bf16.mxu0 0
        %1103 = vmatpush1.bf16.msra.mxu0 %v1095
        %1104 = vmatprep.subr.bf16.mxu0 0
        %1105 = vmatpush1.bf16.msra.mxu0 %v1096
        %1106 = vmatprep.subr.bf16.mxu0 0
        %1107 = vmatpush1.bf16.msra.mxu0 0
        %1108 = vmatprep.subr.bf16.mxu0 0
        %1109 = vmatpush1.bf16.msra.mxu0 0
        %1110 = vmatprep.subr.bf16.mxu0 0
        %1111 = vmatpush1.bf16.msra.mxu0 0
        %1112 = vmatprep.subr.bf16.mxu0 0
        %1113 = vmatpush1.bf16.msra.mxu0 0
        %1114 = vmatprep.subr.bf16.mxu0 0
        %1115 = vmatpush1.bf16.msra.mxu0 0
        %1116 = vmatprep.subr.bf16.mxu0 0
        %1117 = vmatpush1.bf16.msra.mxu0 0
        %1118 = vmatprep.subr.bf16.mxu0 0
        %1119 = vmatpush1.bf16.msra.mxu0 0
        %1120 = vmatprep.subr.bf16.mxu0 0
        %1121 = vmatpush1.bf16.msra.mxu0 0
        %1122 = vmatprep.subr.bf16.mxu0 0
        %1123 = vmatpush1.bf16.msra.mxu0 0
        %1124 = vmatprep.subr.bf16.mxu0 0
        %1125 = vmatpush1.bf16.msra.mxu0 0
        %1126 = vmatprep.subr.bf16.mxu0 0
        %1127 = vmatpush1.bf16.msra.mxu0 0
        %1128 = vmatprep.subr.bf16.mxu0 0
        %1129 = vmatpush1.bf16.msra.mxu0 0
        %1130 = vmatprep.subr.bf16.mxu0 0
        %1131 = vmatpush1.bf16.msra.mxu0 0
        %1132 = vmatprep.subr.bf16.mxu0 0
        %1133 = vmatpush1.bf16.msra.mxu0 0
        %1134 = vmatprep.mubr.bf16.mxu0 0
        %1135 = vmatmul.mubr.bf16.gmra.mrb[0].mxu0 %v1100
        %v1136 = vpop.f32.mrb[0].mxu0
        %v1137 = vadd.f32 0.0, %v1136
        %v1138 = vpop.f32.mrb[0].mxu0
        %v1139 = vpop.f32.mrb[0].mxu0
        %v1140 = vadd.f32 0.0, %v1139
        %v1141 = vpop.f32.mrb[0].mxu0
        %1142 = vdwg.mxu0
        %v1143 = vld [vmem:[%s702] sm:$0x1]
        %v1145 = vlaneseq
        %v1146 = vshrl.u32 %v1145, 7
        %v1147 = vsub.s32 0, %v1146
        %v1148 = vrot.slane %v1143, %v1147
        %v1150 = vadd.f32 %v1137, %v1148
        %v1151 = vadd.f32 %v1140, %v1148
        %v1152 = vld [vmem:[%s705] sm:$0x1]
        %v1153 = vld [vmem:[%s708] sm:$0x1]
        %v1154 = vadd.f32 %v1150, %v741
        %v1155 = vadd.f32 %v1151, %v742
        %v1156 = vsel %vm770, %v1154, 0.0
        %1157 = vadd.xlane.f32.xlu0 %v1156
        %v1158 = vpop.xlane.xlu0 %1157
        %v1159 = vsel %vm770, %v1155, 0.0
        %1160 = vadd.xlane.f32.xlu0 %v1159
        %v1161 = vpop.xlane.xlu0 %1160
        %v1162 = vrcp.pop 32.0
        %v1163 = vmul.f32 %v1158, %v1162
        %v1164 = vmul.f32 %v1161, %v1162
        %v1165 = vsub.f32 %v1154, %v1163
        %v1166 = vsub.f32 %v1155, %v1164
        %v1167 = vmul.f32 %v1165, %v1165
        %v1168 = vmul.f32 %v1166, %v1166
        %v1169 = vsel %vm770, %v1167, 0.0
        %1170 = vadd.xlane.f32.xlu0 %v1169
        %v1171 = vpop.xlane.xlu0 %1170
        %v1172 = vsel %vm770, %v1168, 0.0
        %1173 = vadd.xlane.f32.xlu0 %v1172
        %v1174 = vpop.xlane.xlu0 %1173
        %v1175 = vmul.f32 %v1171, %v1162
        %v1176 = vmul.f32 %v1174, %v1162
        %v1177 = vadd.f32 %v1175, 1e-05
        %v1178 = vadd.f32 %v1176, 1e-05
        %v1179 = vrsqrt.pop %v1177
        %v1180 = vrsqrt.pop %v1178
        %v1181 = vmul.f32 %v1165, %v1179
        %v1182 = vmul.f32 %v1166, %v1180
        %v1184 = vlaneseq
        %v1185 = vshrl.u32 %v1184, 7
        %v1186 = vsub.s32 0, %v1185
        %v1187 = vrot.slane %v1152, %v1186
        %v1189 = vmul.f32 %v1181, %v1187
        %v1190 = vmul.f32 %v1182, %v1187
        %v1192 = vlaneseq
        %v1193 = vshrl.u32 %v1192, 7
        %v1194 = vsub.s32 0, %v1193
        %v1195 = vrot.slane %v1153, %v1194
        %v1197 = vadd.f32 %v1189, %v1195
        %v1198 = vadd.f32 %v1190, %v1195
        %1200 = vset.pattern.permute.xlu0 0
        %1201 = vperm.xlu0 %1200, %v744
        %v1202 = vpop.permute.xlu0 %1201
        %1205 = vset.pattern.permute.xlu0 0
        %1206 = vperm.xlu0 %1205, %v745
        %v1207 = vpop.permute.xlu0 %1206
        %v1209 = vmul.f32 %v1197, %v1202
        %v1210 = vmul.f32 %v1198, %v1207
        %v1211 = vld [vmem:[%s716] sm:$0x1]
        %v1212 = vpack.c.bf16 %v1210, %v1209
        %v1213 = vlaneseq
        %v1214 = vshrl.u32 %v1213, 7
        %v1215 = vadd.s32 %v1214, 8
        %v1216 = vld [vmem:[%s713] sm:$0xf]
        %v1217 = vld [vmem:[%s713 + $0x4] sm:$0xf]
        %v1218 = vld [vmem:[%s713 + $0x8] sm:$0xf]
        %v1219 = vld [vmem:[%s713 + $0xc] sm:$0xf]
        %v1224 = vunpack.c.l.b16 %v1216
        %v1225 = vunpack.c.l.b16 %v1217
        %v1226 = vunpack.c.l.b16 %v1218
        %v1227 = vunpack.c.l.b16 %v1219
        %v1228 = vpack.c.b16 %v1225, %v1224
        %v1229 = vpack.c.b16 %v1227, %v1226
        %v1233 = vsel %vm770, %v1212, 0
        %1235 = vmatprep.subr.bf16.mxu0 0
        %1236 = vmatpush1.bf16.msra.mxu0 %v1228
        %1237 = vmatprep.subr.bf16.mxu0 0
        %1238 = vmatpush1.bf16.msra.mxu0 %v1229
        %1239 = vmatprep.subr.bf16.mxu0 0
        %1240 = vmatpush1.bf16.msra.mxu0 0
        %1241 = vmatprep.subr.bf16.mxu0 0
        %1242 = vmatpush1.bf16.msra.mxu0 0
        %1243 = vmatprep.subr.bf16.mxu0 0
        %1244 = vmatpush1.bf16.msra.mxu0 0
        %1245 = vmatprep.subr.bf16.mxu0 0
        %1246 = vmatpush1.bf16.msra.mxu0 0
        %1247 = vmatprep.subr.bf16.mxu0 0
        %1248 = vmatpush1.bf16.msra.mxu0 0
        %1249 = vmatprep.subr.bf16.mxu0 0
        %1250 = vmatpush1.bf16.msra.mxu0 0
        %1251 = vmatprep.subr.bf16.mxu0 0
        %1252 = vmatpush1.bf16.msra.mxu0 0
        %1253 = vmatprep.subr.bf16.mxu0 0
        %1254 = vmatpush1.bf16.msra.mxu0 0
        %1255 = vmatprep.subr.bf16.mxu0 0
        %1256 = vmatpush1.bf16.msra.mxu0 0
        %1257 = vmatprep.subr.bf16.mxu0 0
        %1258 = vmatpush1.bf16.msra.mxu0 0
        %1259 = vmatprep.subr.bf16.mxu0 0
        %1260 = vmatpush1.bf16.msra.mxu0 0
        %1261 = vmatprep.subr.bf16.mxu0 0
        %1262 = vmatpush1.bf16.msra.mxu0 0
        %1263 = vmatprep.subr.bf16.mxu0 0
        %1264 = vmatpush1.bf16.msra.mxu0 0
        %1265 = vmatprep.subr.bf16.mxu0 0
        %1266 = vmatpush1.bf16.msra.mxu0 0
        %1267 = vmatprep.mubr.bf16.mxu0 0
        %1268 = vmatmul.mubr.bf16.gmra.mrb[0].mxu0 %v1233
        %v1269 = vpop.f32.mrb[0].mxu0
        %v1270 = vadd.f32 0.0, %v1269
        %v1271 = vpop.f32.mrb[0].mxu0
        %v1272 = vpop.f32.mrb[0].mxu0
        %v1273 = vadd.f32 0.0, %v1272
        %v1274 = vpop.f32.mrb[0].mxu0
        %1275 = vdwg.mxu0
        %v1276 = vrot.slane %v1270, 7
        %v1277 = vrot.slane %v1273, 7
        %vm1278 = vcmp.lt.s32.totalorder %v1214, 1
        %v1279 = vsel %vm1278, %v1276, %v1277
        %v1280 = vsel %vm1278, %v1277, %v1276
        %vm1281 = vcmp.ge.s32.totalorder %v1214, 1
        %vm1282 = vcmp.ge.s32.totalorder %v1215, 1
        %vm1283 = vcmp.lt.s32.totalorder %v1214, 17
        %vm1284 = vcmp.lt.s32.totalorder %v1215, 17
        %vm1285 = vmand %vm1281, %vm1283
        %vm1286 = vmand %vm1282, %vm1284
        %v1287 = vsel %vm1285, 1, 0
        %v1288 = vsel %vm1286, 1, 0
        %v1289 = vcvt.s32.f32 %v1287
        %v1290 = vcvt.s32.f32 %v1288
        %v1291 = vmul.f32 %v1280, %v1289
        %v1292 = vmul.f32 %v1279, %v1290
        %v1293 = vadd.f32 %v1291, 0.0
        %v1294 = vadd.f32 %v1292, 0.0
        %s1295 = scalar_lea.vmem %s713, 16
        %v1296 = vld [vmem:[%s1295] sm:$0xf]
        %v1297 = vld [vmem:[%s1295 + $0x4] sm:$0xf]
        %v1298 = vld [vmem:[%s1295 + $0x8] sm:$0xf]
        %v1299 = vld [vmem:[%s1295 + $0xc] sm:$0xf]
        %v1304 = vunpack.c.l.b16 %v1296
        %v1305 = vunpack.c.l.b16 %v1297
        %v1306 = vunpack.c.l.b16 %v1298
        %v1307 = vunpack.c.l.b16 %v1299
        %v1308 = vpack.c.b16 %v1305, %v1304
        %v1309 = vpack.c.b16 %v1307, %v1306
        %1312 = vmatprep.subr.bf16.mxu0 0
        %1313 = vmatpush1.bf16.msra.mxu0 %v1308
        %1314 = vmatprep.subr.bf16.mxu0 0
        %1315 = vmatpush1.bf16.msra.mxu0 %v1309
        %1316 = vmatprep.subr.bf16.mxu0 0
        %1317 = vmatpush1.bf16.msra.mxu0 0
        %1318 = vmatprep.subr.bf16.mxu0 0
        %1319 = vmatpush1.bf16.msra.mxu0 0
        %1320 = vmatprep.subr.bf16.mxu0 0
        %1321 = vmatpush1.bf16.msra.mxu0 0
        %1322 = vmatprep.subr.bf16.mxu0 0
        %1323 = vmatpush1.bf16.msra.mxu0 0
        %1324 = vmatprep.subr.bf16.mxu0 0
        %1325 = vmatpush1.bf16.msra.mxu0 0
        %1326 = vmatprep.subr.bf16.mxu0 0
        %1327 = vmatpush1.bf16.msra.mxu0 0
        %1328 = vmatprep.subr.bf16.mxu0 0
        %1329 = vmatpush1.bf16.msra.mxu0 0
        %1330 = vmatprep.subr.bf16.mxu0 0
        %1331 = vmatpush1.bf16.msra.mxu0 0
        %1332 = vmatprep.subr.bf16.mxu0 0
        %1333 = vmatpush1.bf16.msra.mxu0 0
        %1334 = vmatprep.subr.bf16.mxu0 0
        %1335 = vmatpush1.bf16.msra.mxu0 0
        %1336 = vmatprep.subr.bf16.mxu0 0
        %1337 = vmatpush1.bf16.msra.mxu0 0
        %1338 = vmatprep.subr.bf16.mxu0 0
        %1339 = vmatpush1.bf16.msra.mxu0 0
        %1340 = vmatprep.subr.bf16.mxu0 0
        %1341 = vmatpush1.bf16.msra.mxu0 0
        %1342 = vmatprep.subr.bf16.mxu0 0
        %1343 = vmatpush1.bf16.msra.mxu0 0
        %1344 = vmatprep.mubr.bf16.mxu0 0
        %1345 = vmatmul.mubr.bf16.gmra.mrb[0].mxu0 %v1233
        %v1346 = vpop.f32.mrb[0].mxu0
        %v1347 = vadd.f32 0.0, %v1346
        %v1348 = vpop.f32.mrb[0].mxu0
        %v1349 = vpop.f32.mrb[0].mxu0
        %v1350 = vadd.f32 0.0, %v1349
        %v1351 = vpop.f32.mrb[0].mxu0
        %1352 = vdwg.mxu0
        %v1353 = vadd.f32 %v1293, %v1347
        %v1354 = vadd.f32 %v1294, %v1350
        %s1355 = scalar_lea.vmem %s713, 32
        %v1356 = vld [vmem:[%s1355] sm:$0xf]
        %v1357 = vld [vmem:[%s1355 + $0x4] sm:$0xf]
        %v1358 = vld [vmem:[%s1355 + $0x8] sm:$0xf]
        %v1359 = vld [vmem:[%s1355 + $0xc] sm:$0xf]
        %v1364 = vunpack.c.l.b16 %v1356
        %v1365 = vunpack.c.l.b16 %v1357
        %v1366 = vunpack.c.l.b16 %v1358
        %v1367 = vunpack.c.l.b16 %v1359
        %v1368 = vpack.c.b16 %v1365, %v1364
        %v1369 = vpack.c.b16 %v1367, %v1366
        %1372 = vmatprep.subr.bf16.mxu0 0
        %1373 = vmatpush1.bf16.msra.mxu0 %v1368
        %1374 = vmatprep.subr.bf16.mxu0 0
        %1375 = vmatpush1.bf16.msra.mxu0 %v1369
        %1376 = vmatprep.subr.bf16.mxu0 0
        %1377 = vmatpush1.bf16.msra.mxu0 0
        %1378 = vmatprep.subr.bf16.mxu0 0
        %1379 = vmatpush1.bf16.msra.mxu0 0
        %1380 = vmatprep.subr.bf16.mxu0 0
        %1381 = vmatpush1.bf16.msra.mxu0 0
        %1382 = vmatprep.subr.bf16.mxu0 0
        %1383 = vmatpush1.bf16.msra.mxu0 0
        %1384 = vmatprep.subr.bf16.mxu0 0
        %1385 = vmatpush1.bf16.msra.mxu0 0
        %1386 = vmatprep.subr.bf16.mxu0 0
        %1387 = vmatpush1.bf16.msra.mxu0 0
        %1388 = vmatprep.subr.bf16.mxu0 0
        %1389 = vmatpush1.bf16.msra.mxu0 0
        %1390 = vmatprep.subr.bf16.mxu0 0
        %1391 = vmatpush1.bf16.msra.mxu0 0
        %1392 = vmatprep.subr.bf16.mxu0 0
        %1393 = vmatpush1.bf16.msra.mxu0 0
        %1394 = vmatprep.subr.bf16.mxu0 0
        %1395 = vmatpush1.bf16.msra.mxu0 0
        %1396 = vmatprep.subr.bf16.mxu0 0
        %1397 = vmatpush1.bf16.msra.mxu0 0
        %1398 = vmatprep.subr.bf16.mxu0 0
        %1399 = vmatpush1.bf16.msra.mxu0 0
        %1400 = vmatprep.subr.bf16.mxu0 0
        %1401 = vmatpush1.bf16.msra.mxu0 0
        %1402 = vmatprep.subr.bf16.mxu0 0
        %1403 = vmatpush1.bf16.msra.mxu0 0
        %1404 = vmatprep.mubr.bf16.mxu0 0
        %1405 = vmatmul.mubr.bf16.gmra.mrb[0].mxu0 %v1233
        %v1406 = vpop.f32.mrb[0].mxu0
        %v1407 = vadd.f32 0.0, %v1406
        %v1408 = vpop.f32.mrb[0].mxu0
        %v1409 = vpop.f32.mrb[0].mxu0
        %v1410 = vadd.f32 0.0, %v1409
        %v1411 = vpop.f32.mrb[0].mxu0
        %1412 = vdwg.mxu0
        %v1413 = vrot.slane %v1407, 1
        %v1414 = vrot.slane %v1410, 1
        %vm1415 = vcmp.lt.s32.totalorder %v1214, 7
        %v1416 = vsel %vm1415, %v1413, %v1414
        %v1417 = vsel %vm1415, %v1414, %v1413
        %vm1418 = vcmp.ge.s32.totalorder %v1214, 4294967295
        %vm1419 = vcmp.ge.s32.totalorder %v1215, 4294967295
        %vm1420 = vcmp.lt.s32.totalorder %v1214, 15
        %vm1421 = vcmp.lt.s32.totalorder %v1215, 15
        %vm1422 = vmand %vm1418, %vm1420
        %vm1423 = vmand %vm1419, %vm1421
        %v1424 = vsel %vm1422, 1, 0
        %v1425 = vsel %vm1423, 1, 0
        %v1426 = vcvt.s32.f32 %v1424
        %v1427 = vcvt.s32.f32 %v1425
        %v1428 = vmul.f32 %v1416, %v1426
        %v1429 = vmul.f32 %v1417, %v1427
        %v1430 = vadd.f32 %v1353, %v1428
        %v1431 = vadd.f32 %v1354, %v1429
        %v1433 = vlaneseq
        %v1434 = vshrl.u32 %v1433, 7
        %v1435 = vsub.s32 0, %v1434
        %v1436 = vrot.slane %v1211, %v1435
        %v1438 = vadd.f32 %v1430, %v1436
        %v1439 = vadd.f32 %v1431, %v1436
        %v1440 = vmax.f32 %v1438, 0.0
        %v1441 = vmax.f32 %v1439, 0.0
        %v1442 = vld [vmem:[%s724] sm:$0x1]
        %v1443 = vpack.c.bf16 %v1441, %v1440
        %v1444 = vld [vmem:[%s721] sm:$0xf]
        %v1445 = vld [vmem:[%s721 + $0x4] sm:$0xf]
        %v1446 = vld [vmem:[%s721 + $0x8] sm:$0xf]
        %v1447 = vld [vmem:[%s721 + $0xc] sm:$0xf]
        %v1448 = vld [vmem:[%s721 + $0x10] sm:$0xf]
        %v1449 = vld [vmem:[%s721 + $0x14] sm:$0xf]
        %v1450 = vld [vmem:[%s721 + $0x18] sm:$0xf]
        %v1451 = vld [vmem:[%s721 + $0x1c] sm:$0xf]
        %v1452 = vld [vmem:[%s721 + $0x20] sm:$0xf]
        %v1453 = vld [vmem:[%s721 + $0x24] sm:$0xf]
        %v1454 = vld [vmem:[%s721 + $0x28] sm:$0xf]
        %v1455 = vld [vmem:[%s721 + $0x2c] sm:$0xf]
        %v1456 = vld [vmem:[%s721 + $0x30] sm:$0xf]
        %v1457 = vld [vmem:[%s721 + $0x34] sm:$0xf]
        %v1458 = vld [vmem:[%s721 + $0x38] sm:$0xf]
        %v1459 = vld [vmem:[%s721 + $0x3c] sm:$0xf]
        %v1476 = vunpack.c.l.b16 %v1444
        %v1477 = vunpack.c.l.b16 %v1445
        %v1478 = vunpack.c.l.b16 %v1446
        %v1479 = vunpack.c.l.b16 %v1447
        %v1480 = vunpack.c.l.b16 %v1448
        %v1481 = vunpack.c.l.b16 %v1449
        %v1482 = vunpack.c.l.b16 %v1450
        %v1483 = vunpack.c.l.b16 %v1451
        %v1484 = vunpack.c.l.b16 %v1452
        %v1485 = vunpack.c.l.b16 %v1453
        %v1486 = vunpack.c.l.b16 %v1454
        %v1487 = vunpack.c.l.b16 %v1455
        %v1488 = vunpack.c.l.b16 %v1456
        %v1489 = vunpack.c.l.b16 %v1457
        %v1490 = vunpack.c.l.b16 %v1458
        %v1491 = vunpack.c.l.b16 %v1459
        %v1492 = vpack.c.b16 %v1477, %v1476
        %v1493 = vpack.c.b16 %v1479, %v1478
        %v1494 = vpack.c.b16 %v1481, %v1480
        %v1495 = vpack.c.b16 %v1483, %v1482
        %v1496 = vpack.c.b16 %v1485, %v1484
        %v1497 = vpack.c.b16 %v1487, %v1486
        %v1498 = vpack.c.b16 %v1489, %v1488
        %v1499 = vpack.c.b16 %v1491, %v1490
        %1508 = vmatprep.subr.bf16.mxu0 0
        %1509 = vmatpush1.bf16.msra.mxu0 %v1492
        %1510 = vmatprep.subr.bf16.mxu0 0
        %1511 = vmatpush1.bf16.msra.mxu0 %v1493
        %1512 = vmatprep.subr.bf16.mxu0 0
        %1513 = vmatpush1.bf16.msra.mxu0 %v1494
        %1514 = vmatprep.subr.bf16.mxu0 0
        %1515 = vmatpush1.bf16.msra.mxu0 %v1495
        %1516 = vmatprep.subr.bf16.mxu0 0
        %1517 = vmatpush1.bf16.msra.mxu0 %v1496
        %1518 = vmatprep.subr.bf16.mxu0 0
        %1519 = vmatpush1.bf16.msra.mxu0 %v1497
        %1520 = vmatprep.subr.bf16.mxu0 0
        %1521 = vmatpush1.bf16.msra.mxu0 %v1498
        %1522 = vmatprep.subr.bf16.mxu0 0
        %1523 = vmatpush1.bf16.msra.mxu0 %v1499
        %1524 = vmatprep.subr.bf16.mxu0 0
        %1525 = vmatpush1.bf16.msra.mxu0 0
        %1526 = vmatprep.subr.bf16.mxu0 0
        %1527 = vmatpush1.bf16.msra.mxu0 0
        %1528 = vmatprep.subr.bf16.mxu0 0
        %1529 = vmatpush1.bf16.msra.mxu0 0
        %1530 = vmatprep.subr.bf16.mxu0 0
        %1531 = vmatpush1.bf16.msra.mxu0 0
        %1532 = vmatprep.subr.bf16.mxu0 0
        %1533 = vmatpush1.bf16.msra.mxu0 0
        %1534 = vmatprep.subr.bf16.mxu0 0
        %1535 = vmatpush1.bf16.msra.mxu0 0
        %1536 = vmatprep.subr.bf16.mxu0 0
        %1537 = vmatpush1.bf16.msra.mxu0 0
        %1538 = vmatprep.subr.bf16.mxu0 0
        %1539 = vmatpush1.bf16.msra.mxu0 0
        %1540 = vmatprep.mubr.bf16.mxu0 0
        %1541 = vmatmul.mubr.bf16.gmra.mrb[0].mxu0 %v1443
        %v1542 = vpop.f32.mrb[0].mxu0
        %v1543 = vadd.f32 0.0, %v1542
        %v1544 = vpop.f32.mrb[0].mxu0
        %v1545 = vpop.f32.mrb[0].mxu0
        %v1546 = vadd.f32 0.0, %v1545
        %v1547 = vpop.f32.mrb[0].mxu0
        %1548 = vdwg.mxu0
        %v1549 = vrot.slane %v1543, 7
        %v1550 = vrot.slane %v1546, 7
        %v1551 = vsel %vm1278, %v1549, %v1550
        %v1552 = vsel %vm1278, %v1550, %v1549
        %v1553 = vmul.f32 %v1552, %v1289
        %v1554 = vmul.f32 %v1551, %v1290
        %v1555 = vadd.f32 %v1553, 0.0
        %v1556 = vadd.f32 %v1554, 0.0
        %s1557 = scalar_lea.vmem %s721, 64
        %v1558 = vld [vmem:[%s1557] sm:$0xf]
        %v1559 = vld [vmem:[%s1557 + $0x4] sm:$0xf]
        %v1560 = vld [vmem:[%s1557 + $0x8] sm:$0xf]
        %v1561 = vld [vmem:[%s1557 + $0xc] sm:$0xf]
        %v1562 = vld [vmem:[%s1557 + $0x10] sm:$0xf]
        %v1563 = vld [vmem:[%s1557 + $0x14] sm:$0xf]
        %v1564 = vld [vmem:[%s1557 + $0x18] sm:$0xf]
        %v1565 = vld [vmem:[%s1557 + $0x1c] sm:$0xf]
        %v1566 = vld [vmem:[%s1557 + $0x20] sm:$0xf]
        %v1567 = vld [vmem:[%s1557 + $0x24] sm:$0xf]
        %v1568 = vld [vmem:[%s1557 + $0x28] sm:$0xf]
        %v1569 = vld [vmem:[%s1557 + $0x2c] sm:$0xf]
        %v1570 = vld [vmem:[%s1557 + $0x30] sm:$0xf]
        %v1571 = vld [vmem:[%s1557 + $0x34] sm:$0xf]
        %v1572 = vld [vmem:[%s1557 + $0x38] sm:$0xf]
        %v1573 = vld [vmem:[%s1557 + $0x3c] sm:$0xf]
        %v1590 = vunpack.c.l.b16 %v1558
        %v1591 = vunpack.c.l.b16 %v1559
        %v1592 = vunpack.c.l.b16 %v1560
        %v1593 = vunpack.c.l.b16 %v1561
        %v1594 = vunpack.c.l.b16 %v1562
        %v1595 = vunpack.c.l.b16 %v1563
        %v1596 = vunpack.c.l.b16 %v1564
        %v1597 = vunpack.c.l.b16 %v1565
        %v1598 = vunpack.c.l.b16 %v1566
        %v1599 = vunpack.c.l.b16 %v1567
        %v1600 = vunpack.c.l.b16 %v1568
        %v1601 = vunpack.c.l.b16 %v1569
        %v1602 = vunpack.c.l.b16 %v1570
        %v1603 = vunpack.c.l.b16 %v1571
        %v1604 = vunpack.c.l.b16 %v1572
        %v1605 = vunpack.c.l.b16 %v1573
        %v1606 = vpack.c.b16 %v1591, %v1590
        %v1607 = vpack.c.b16 %v1593, %v1592
        %v1608 = vpack.c.b16 %v1595, %v1594
        %v1609 = vpack.c.b16 %v1597, %v1596
        %v1610 = vpack.c.b16 %v1599, %v1598
        %v1611 = vpack.c.b16 %v1601, %v1600
        %v1612 = vpack.c.b16 %v1603, %v1602
        %v1613 = vpack.c.b16 %v1605, %v1604
        %1622 = vmatprep.subr.bf16.mxu0 0
        %1623 = vmatpush1.bf16.msra.mxu0 %v1606
        %1624 = vmatprep.subr.bf16.mxu0 0
        %1625 = vmatpush1.bf16.msra.mxu0 %v1607
        %1626 = vmatprep.subr.bf16.mxu0 0
        %1627 = vmatpush1.bf16.msra.mxu0 %v1608
        %1628 = vmatprep.subr.bf16.mxu0 0
        %1629 = vmatpush1.bf16.msra.mxu0 %v1609
        %1630 = vmatprep.subr.bf16.mxu0 0
        %1631 = vmatpush1.bf16.msra.mxu0 %v1610
        %1632 = vmatprep.subr.bf16.mxu0 0
        %1633 = vmatpush1.bf16.msra.mxu0 %v1611
        %1634 = vmatprep.subr.bf16.mxu0 0
        %1635 = vmatpush1.bf16.msra.mxu0 %v1612
        %1636 = vmatprep.subr.bf16.mxu0 0
        %1637 = vmatpush1.bf16.msra.mxu0 %v1613
        %1638 = vmatprep.subr.bf16.mxu0 0
        %1639 = vmatpush1.bf16.msra.mxu0 0
        %1640 = vmatprep.subr.bf16.mxu0 0
        %1641 = vmatpush1.bf16.msra.mxu0 0
        %1642 = vmatprep.subr.bf16.mxu0 0
        %1643 = vmatpush1.bf16.msra.mxu0 0
        %1644 = vmatprep.subr.bf16.mxu0 0
        %1645 = vmatpush1.bf16.msra.mxu0 0
        %1646 = vmatprep.subr.bf16.mxu0 0
        %1647 = vmatpush1.bf16.msra.mxu0 0
        %1648 = vmatprep.subr.bf16.mxu0 0
        %1649 = vmatpush1.bf16.msra.mxu0 0
        %1650 = vmatprep.subr.bf16.mxu0 0
        %1651 = vmatpush1.bf16.msra.mxu0 0
        %1652 = vmatprep.subr.bf16.mxu0 0
        %1653 = vmatpush1.bf16.msra.mxu0 0
        %1654 = vmatprep.mubr.bf16.mxu0 0
        %1655 = vmatmul.mubr.bf16.gmra.mrb[0].mxu0 %v1443
        %v1656 = vpop.f32.mrb[0].mxu0
        %v1657 = vadd.f32 0.0, %v1656
        %v1658 = vpop.f32.mrb[0].mxu0
        %v1659 = vpop.f32.mrb[0].mxu0
        %v1660 = vadd.f32 0.0, %v1659
        %v1661 = vpop.f32.mrb[0].mxu0
        %1662 = vdwg.mxu0
        %v1663 = vadd.f32 %v1555, %v1657
        %v1664 = vadd.f32 %v1556, %v1660
        %s1665 = scalar_lea.vmem %s721, 128
        %v1666 = vld [vmem:[%s1665] sm:$0xf]
        %v1667 = vld [vmem:[%s1665 + $0x4] sm:$0xf]
        %v1668 = vld [vmem:[%s1665 + $0x8] sm:$0xf]
        %v1669 = vld [vmem:[%s1665 + $0xc] sm:$0xf]
        %v1670 = vld [vmem:[%s1665 + $0x10] sm:$0xf]
        %v1671 = vld [vmem:[%s1665 + $0x14] sm:$0xf]
        %v1672 = vld [vmem:[%s1665 + $0x18] sm:$0xf]
        %v1673 = vld [vmem:[%s1665 + $0x1c] sm:$0xf]
        %v1674 = vld [vmem:[%s1665 + $0x20] sm:$0xf]
        %v1675 = vld [vmem:[%s1665 + $0x24] sm:$0xf]
        %v1676 = vld [vmem:[%s1665 + $0x28] sm:$0xf]
        %v1677 = vld [vmem:[%s1665 + $0x2c] sm:$0xf]
        %v1678 = vld [vmem:[%s1665 + $0x30] sm:$0xf]
        %v1679 = vld [vmem:[%s1665 + $0x34] sm:$0xf]
        %v1680 = vld [vmem:[%s1665 + $0x38] sm:$0xf]
        %v1681 = vld [vmem:[%s1665 + $0x3c] sm:$0xf]
        %v1698 = vunpack.c.l.b16 %v1666
        %v1699 = vunpack.c.l.b16 %v1667
        %v1700 = vunpack.c.l.b16 %v1668
        %v1701 = vunpack.c.l.b16 %v1669
        %v1702 = vunpack.c.l.b16 %v1670
        %v1703 = vunpack.c.l.b16 %v1671
        %v1704 = vunpack.c.l.b16 %v1672
        %v1705 = vunpack.c.l.b16 %v1673
        %v1706 = vunpack.c.l.b16 %v1674
        %v1707 = vunpack.c.l.b16 %v1675
        %v1708 = vunpack.c.l.b16 %v1676
        %v1709 = vunpack.c.l.b16 %v1677
        %v1710 = vunpack.c.l.b16 %v1678
        %v1711 = vunpack.c.l.b16 %v1679
        %v1712 = vunpack.c.l.b16 %v1680
        %v1713 = vunpack.c.l.b16 %v1681
        %v1714 = vpack.c.b16 %v1699, %v1698
        %v1715 = vpack.c.b16 %v1701, %v1700
        %v1716 = vpack.c.b16 %v1703, %v1702
        %v1717 = vpack.c.b16 %v1705, %v1704
        %v1718 = vpack.c.b16 %v1707, %v1706
        %v1719 = vpack.c.b16 %v1709, %v1708
        %v1720 = vpack.c.b16 %v1711, %v1710
        %v1721 = vpack.c.b16 %v1713, %v1712
        %1730 = vmatprep.subr.bf16.mxu0 0
        %1731 = vmatpush1.bf16.msra.mxu0 %v1714
        %1732 = vmatprep.subr.bf16.mxu0 0
        %1733 = vmatpush1.bf16.msra.mxu0 %v1715
        %1734 = vmatprep.subr.bf16.mxu0 0
        %1735 = vmatpush1.bf16.msra.mxu0 %v1716
        %1736 = vmatprep.subr.bf16.mxu0 0
        %1737 = vmatpush1.bf16.msra.mxu0 %v1717
        %1738 = vmatprep.subr.bf16.mxu0 0
        %1739 = vmatpush1.bf16.msra.mxu0 %v1718
        %1740 = vmatprep.subr.bf16.mxu0 0
        %1741 = vmatpush1.bf16.msra.mxu0 %v1719
        %1742 = vmatprep.subr.bf16.mxu0 0
        %1743 = vmatpush1.bf16.msra.mxu0 %v1720
        %1744 = vmatprep.subr.bf16.mxu0 0
        %1745 = vmatpush1.bf16.msra.mxu0 %v1721
        %1746 = vmatprep.subr.bf16.mxu0 0
        %1747 = vmatpush1.bf16.msra.mxu0 0
        %1748 = vmatprep.subr.bf16.mxu0 0
        %1749 = vmatpush1.bf16.msra.mxu0 0
        %1750 = vmatprep.subr.bf16.mxu0 0
        %1751 = vmatpush1.bf16.msra.mxu0 0
        %1752 = vmatprep.subr.bf16.mxu0 0
        %1753 = vmatpush1.bf16.msra.mxu0 0
        %1754 = vmatprep.subr.bf16.mxu0 0
        %1755 = vmatpush1.bf16.msra.mxu0 0
        %1756 = vmatprep.subr.bf16.mxu0 0
        %1757 = vmatpush1.bf16.msra.mxu0 0
        %1758 = vmatprep.subr.bf16.mxu0 0
        %1759 = vmatpush1.bf16.msra.mxu0 0
        %1760 = vmatprep.subr.bf16.mxu0 0
        %1761 = vmatpush1.bf16.msra.mxu0 0
        %1762 = vmatprep.mubr.bf16.mxu0 0
        %1763 = vmatmul.mubr.bf16.gmra.mrb[0].mxu0 %v1443
        %v1764 = vpop.f32.mrb[0].mxu0
        %v1765 = vadd.f32 0.0, %v1764
        %v1766 = vpop.f32.mrb[0].mxu0
        %v1767 = vpop.f32.mrb[0].mxu0
        %v1768 = vadd.f32 0.0, %v1767
        %v1769 = vpop.f32.mrb[0].mxu0
        %1770 = vdwg.mxu0
        %v1771 = vrot.slane %v1765, 1
        %v1772 = vrot.slane %v1768, 1
        %v1773 = vsel %vm1415, %v1771, %v1772
        %v1774 = vsel %vm1415, %v1772, %v1771
        %v1775 = vmul.f32 %v1773, %v1426
        %v1776 = vmul.f32 %v1774, %v1427
        %v1777 = vadd.f32 %v1663, %v1775
        %v1778 = vadd.f32 %v1664, %v1776
        %v1780 = vlaneseq
        %v1781 = vshrl.u32 %v1780, 7
        %v1782 = vsub.s32 0, %v1781
        %v1783 = vrot.slane %v1442, %v1782
        %v1785 = vadd.f32 %v1777, %v1783
        %v1786 = vadd.f32 %v1778, %v1783
        %v1787 = vld [vmem:[%s727] sm:$0x1]
        %v1788 = vld [vmem:[%s730] sm:$0x1]
        %v1789 = vadd.f32 %v1785, %v1209
        %v1790 = vadd.f32 %v1786, %v1210
        %v1791 = vsel %vm770, %v1789, 0.0
        %1792 = vadd.xlane.f32.xlu0 %v1791
        %v1793 = vpop.xlane.xlu0 %1792
        %v1794 = vsel %vm770, %v1790, 0.0
        %1795 = vadd.xlane.f32.xlu0 %v1794
        %v1796 = vpop.xlane.xlu0 %1795
        %v1797 = vmul.f32 %v1793, %v1162
        %v1798 = vmul.f32 %v1796, %v1162
        %v1799 = vsub.f32 %v1789, %v1797
        %v1800 = vsub.f32 %v1790, %v1798
        %v1801 = vmul.f32 %v1799, %v1799
        %v1802 = vmul.f32 %v1800, %v1800
        %v1803 = vsel %vm770, %v1801, 0.0
        %1804 = vadd.xlane.f32.xlu0 %v1803
        %v1805 = vpop.xlane.xlu0 %1804
        %v1806 = vsel %vm770, %v1802, 0.0
        %1807 = vadd.xlane.f32.xlu0 %v1806
        %v1808 = vpop.xlane.xlu0 %1807
        %v1809 = vmul.f32 %v1805, %v1162
        %v1810 = vmul.f32 %v1808, %v1162
        %v1811 = vadd.f32 %v1809, 1e-05
        %v1812 = vadd.f32 %v1810, 1e-05
        %v1813 = vrsqrt.pop %v1811
        %v1814 = vrsqrt.pop %v1812
        %v1815 = vmul.f32 %v1799, %v1813
        %v1816 = vmul.f32 %v1800, %v1814
        %v1818 = vlaneseq
        %v1819 = vshrl.u32 %v1818, 7
        %v1820 = vsub.s32 0, %v1819
        %v1821 = vrot.slane %v1787, %v1820
        %v1823 = vmul.f32 %v1815, %v1821
        %v1824 = vmul.f32 %v1816, %v1821
        %v1826 = vlaneseq
        %v1827 = vshrl.u32 %v1826, 7
        %v1828 = vsub.s32 0, %v1827
        %v1829 = vrot.slane %v1788, %v1828
        %v1831 = vadd.f32 %v1823, %v1829
        %v1832 = vadd.f32 %v1824, %v1829
        %v1833 = vmul.f32 %v1831, %v1202
        %v1834 = vmul.f32 %v1832, %v1207
        %1835 = vst.msk [vmem:[%s673] sm:$0xff] %vm770, %v1833
        %1836 = vst.msk [vmem:[%s673 + $0x8] sm:$0xff] %vm770, %v1834
        %s1837 = sand.u32 %s439, 1
        %s1838 = scalar_lea.sflag [#allocation3], %s1837
        %s1839 = sand.u32 %s439, 1
        %s1840 = smul.addr %s1839, 16
        %s1841 = scalar_lea.vmem [#allocation2], %s1840
        // Predicated region
        $region85: #{tpu_custom_call.1} parent=79 // pred_check
          %p1842 = pneg %p449
        $region86: #{tpu_custom_call.1} parent=79 // pred_check_branch
          %1844 = sbr.rel (%p1842) target = $region88
        $region87: #{tpu_custom_call.1} parent=79 // pred_region
          %s1846 = ssub.s32 256, 256
          %1847 = vsyncadd %s1838, %s1846
          %s1848 = smul.addr %s33, 2
          %s1849 = smul.addr %s1848, 128
          %s1850 = scalar_lea.hbm %s15, %s1849
          %s1851 = sshll.u32 %s1841, 4
          %s1852 = int_to_ptr.vmem [resolvable:$true] %s1851
          %1857 = dma.vmem_to_hbm [thread:$0]  %s1852, 256, %s1850, %s1838, 128, 128, 8
        $region88: #{tpu_custom_call.1} parent=79 // pred_fallthru
          _
      $region80: #{tpu_custom_call.1} parent=5 // pred_fallthru
        _
      %p1858 = scmp.le.s32.totalorder 2, %s24
      // Predicated region
      $region89: #{tpu_custom_call.1} parent=5 // pred_check
        %p1859 = pneg %p1858
      $region90: #{tpu_custom_call.1} parent=5 // pred_check_branch
        %1861 = sbr.rel (%p1859) target = $region92
      $region91: #{tpu_custom_call.1} parent=5 // pred_region
        %s1862 = ssub.s32 %s24, 2
        // Predicated region
        $region93: #{tpu_custom_call.1} parent=91 // pred_check
          %p1863 = pneg %p455
        $region94: #{tpu_custom_call.1} parent=91 // pred_check_branch
          %1865 = sbr.rel (%p1863) target = $region96
        $region95: #{tpu_custom_call.1} parent=91 // pred_region
          %s1866 = sand.u32 %s440, 1
          %s1867 = scalar_lea.sflag [#allocation3], %s1866
          %s1868 = sand.u32 %s440, 1
          %s1869 = smul.addr %s1868, 16
          %s1870 = scalar_lea.vmem [#allocation2], %s1869
          %1871 = dma.done %s1867, 256
        $region96: #{tpu_custom_call.1} parent=91 // pred_fallthru
          _
      $region92: #{tpu_custom_call.1} parent=5 // pred_fallthru
        _
    $region6: #{tpu_custom_call.1} parent=1 // loop_footer
      %s28 = sadd.s32 1, %s24
    $region7: #{tpu_custom_call.1} parent=1 // loop_footer_branch
      %23 = sbr.rel target = $region3
    $region8: #{tpu_custom_call.1} parent=1 // loop_exit
      _
    %1872 = vsyncpa [#allocation3], 1
    %s1873 = scalar_lea.sflag [#allocation3], 1
    %1874 = vsyncpa %s1873, 1

</llo_original>
